<compile_context>
chip_gen: v5e
topology: v5e:2x2
jax: 0.10.0
libtpu: 0.0.40
codegen_flags: <defaults>
</compile_context>

<pallas_src>
import functools
import math

import jax
import jax.numpy as jnp
import numpy as np
from jax.experimental import pallas as pl
from jax.experimental.pallas import tpu as pltpu


def _tcn_kernel(x_ref, w_ref, b_ref, o_ref, *, K, V, M_tile, align, fold_taps):
    """Fused temporal conv + folded BN for one (sample, T-tile) grid step.

    x_ref: (slab_rows, C_in)   channels-last, time-flattened per-sample slab
    w_ref: (K*C_in, C_pad)     if fold_taps else (K, C_in, C_pad)   BN-scaled
    b_ref: (1, C_pad)          fused conv-bias + BN shift (f32)
    o_ref: (M_tile, C_pad)     lane-dense output tile
    """
    t = pl.program_id(1)
    row0 = t * M_tile
    if align >= 8:
        row0 = pl.multiple_of(row0, align)

    if fold_taps:
        # VMEM-side "im2col": K shifted windows concatenated along lanes, one
        # MXU dot with contraction depth K*C_in (no HBM read amplification).
        lhs = jnp.concatenate(
            [x_ref[pl.ds(row0 + k * V, M_tile), :] for k in range(K)], axis=1)
        acc = jnp.dot(lhs, w_ref[...], preferred_element_type=jnp.float32)
    else:
        # Per-tap dots, accumulated in values (vregs / MXU result buffer).
        acc = jnp.dot(x_ref[pl.ds(row0, M_tile), :], w_ref[0],
                      preferred_element_type=jnp.float32)
        for k in range(1, K):
            acc = acc + jnp.dot(x_ref[pl.ds(row0 + k * V, M_tile), :], w_ref[k],
                                preferred_element_type=jnp.float32)

    o_ref[...] = (acc + b_ref[...]).astype(o_ref.dtype)


def tcn_forward(x, conv_w, conv_b, bn_gamma, bn_beta, bn_mean, bn_var, *,
                stride=1, eps=1e-5, compute_dtype=jnp.bfloat16, out_dtype=None,
                row_target=512, fold_taps=None,
                vmem_budget_bytes=28 * 1024 * 1024):
    """x: (N, C_in, T, V) NCHW.  Returns (N, C_out, T_out, V) NCHW."""
    N, C_in, T, V = x.shape
    C_out, _, K, _ = conv_w.shape
    pad = (K - 1) // 2
    T_pad = T + 2 * pad
    T_out1 = T_pad - K + 1                  # stride-1 output length
    M1 = T_out1 * V
    C_pad = ((C_out + 127) // 128) * 128    # lane-dense output / weight width
    out_dtype = x.dtype if out_dtype is None else out_dtype
    if fold_taps is None:
        fold_taps = C_in < 128              # small contraction -> fold taps

    # ---- T-tile selection: sublane-aligned, >= row_target rows, VMEM-safe ----
    mult = 16 // math.gcd(V, 16)            # T_tile multiple -> M_tile % 16 == 0
    T_tile = max(1, min(T_out1, -(-row_target // V)))
    T_tile = max(mult, (T_tile // mult) * mult)

    in_bytes = jnp.dtype(compute_dtype).itemsize
    ob = jnp.dtype(out_dtype).itemsize

    def vmem_estimate(tt):
        grid_t = -(-T_out1 // tt)
        m_tile = tt * V
        slab_rows = grid_t * m_tile + (K - 1) * V
        e = 2 * slab_rows * C_in * in_bytes        # double-buffered input slab
        e += 2 * m_tile * C_pad * ob               # double-buffered output tile
        e += 2 * K * C_in * C_pad * in_bytes       # weights (dbl-buffered)
        e += m_tile * C_pad * 4                    # f32 value accumulator
        if fold_taps:
            e += m_tile * K * C_in * in_bytes      # concatenated LHS temp
        return e

    while vmem_estimate(T_tile) > vmem_budget_bytes and T_tile > mult:
        T_tile = max(mult, (T_tile // 2 // mult) * mult)

    M_tile = T_tile * V
    grid_t = -(-T_out1 // T_tile)
    M_pad = grid_t * M_tile                  # padded output rows (full tiles)
    slab_rows = M_pad + (K - 1) * V          # padded input rows (halo in-bounds)

    # ---- wrapper glue: channels-last, time-flattened, zero-padded slab ----
    x_pad = jnp.pad(x, ((0, 0), (0, 0), (pad, pad), (0, 0)))
    x_flat = x_pad.transpose(0, 2, 3, 1).reshape(N, T_pad * V, C_in)
    if slab_rows > T_pad * V:
        x_flat = jnp.pad(x_flat, ((0, 0), (0, slab_rows - T_pad * V), (0, 0)))
    x_flat = x_flat.astype(compute_dtype)

    # ---- fold BatchNorm (eval form) into weights + single bias ----
    scale = bn_gamma / jnp.sqrt(bn_var + eps)             # (C_out,)
    w = conv_w[..., 0] * scale[:, None, None]             # (C_out, C_in, K)
    w_k = jnp.transpose(w, (2, 1, 0))                     # (K, C_in, C_out)
    w_k = jnp.pad(w_k, ((0, 0), (0, 0), (0, C_pad - C_out))).astype(compute_dtype)
    if fold_taps:
        w_arg = w_k.reshape(K * C_in, C_pad)
        w_spec = pl.BlockSpec((K * C_in, C_pad), lambda n, t: (0, 0))
    else:
        w_arg = w_k
        w_spec = pl.BlockSpec((K, C_in, C_pad), lambda n, t: (0, 0, 0))
    bias = conv_b * scale + (bn_beta - bn_mean * scale)   # (C_out,)
    bias = jnp.pad(bias, (0, C_pad - C_out))[None, :].astype(jnp.float32)

    align = min(M_tile & (-M_tile), 256)     # largest pow2 factor of the tile

    kernel = functools.partial(_tcn_kernel, K=K, V=V, M_tile=M_tile,
                               align=align, fold_taps=fold_taps)

    out = pl.pallas_call(
        kernel,
        out_shape=jax.ShapeDtypeStruct((N, M_pad, C_pad), out_dtype),
        grid=(N, grid_t),
        in_specs=[
            # whole per-sample slab, resident across the T steps of a sample
            pl.BlockSpec((None, slab_rows, C_in), lambda n, t: (n, 0, 0)),
            w_spec,
            pl.BlockSpec((1, C_pad), lambda n, t: (0, 0)),
        ],
        out_specs=pl.BlockSpec((None, M_tile, C_pad), lambda n, t: (n, t, 0)),
        compiler_params=pltpu.CompilerParams(
            dimension_semantics=("parallel", "parallel"),
            vmem_limit_bytes=48 * 1024 * 1024),
    )(x_flat, w_arg, bias)

    out = out[:, :M1, :C_out].reshape(N, T_out1, V, C_out)
    if stride > 1:
        out = out[:, ::stride]
    return out.transpose(0, 3, 1, 2)


def ref_forward(x, conv_w, conv_b, gamma, beta, mean, var, *, stride=1, eps=1e-5):
    pad = (conv_w.shape[2] - 1) // 2
    out = jax.lax.conv_general_dilated(
        x, conv_w, window_strides=(stride, 1),
        padding=((pad, pad), (0, 0)),
        dimension_numbers=('NCHW', 'OIHW', 'NCHW'))
    out = out + conv_b[None, :, None, None]
    scale = gamma / jnp.sqrt(var + eps)
    shift = beta - mean * scale
    return out * scale[None, :, None, None] + shift[None, :, None, None]


if __name__ == "__main__":
    key = jax.random.PRNGKey(0)

    def make_params(C_in, C_out, K, key):
        kx, kw = jax.random.split(key)
        # conv_init: kaiming_normal(mode='fan_out'), bias = 0
        fan_out = C_out * K * 1
        w_std = float(np.sqrt(2.0 / fan_out))
        conv_w = jax.random.normal(kw, (C_out, C_in, K, 1), jnp.float32) * w_std
        conv_b = jnp.zeros((C_out,), jnp.float32)
        # bn_init(bn, 1): gamma = 1, beta = 0; fresh running stats
        gamma = jnp.ones((C_out,), jnp.float32)
        beta = jnp.zeros((C_out,), jnp.float32)
        mean = jnp.zeros((C_out,), jnp.float32)
        var = jnp.ones((C_out,), jnp.float32)
        return kx, (conv_w, conv_b, gamma, beta, mean, var)

    N, C_in, C_out, T, V, K, stride = 2, 4, 8, 16, 16, 9, 1
    kx, params = make_params(C_in, C_out, K, key)
    x = jax.random.normal(kx, (N, C_in, T, V), dtype=jnp.float32)

    # ---- case 1: fold-taps path (C_in < 128), f32 compute, strict check ----
    ref = jax.block_until_ready(ref_forward(x, *params, stride=stride))
    out = jax.block_until_ready(
        tcn_forward(x, *params, stride=stride, compute_dtype=jnp.float32))
    assert out.shape == (N, C_out, T, V), out.shape
    np.testing.assert_allclose(np.asarray(out), np.asarray(ref),
                               rtol=1e-4, atol=1e-4)

    # ---- case 2: T not divisible by the T-tile -> exercises T-grid + padding ----
    T2 = 40
    x2 = jax.random.normal(jax.random.PRNGKey(1), (N, C_in, T2, V), jnp.float32)
    ref2 = jax.block_until_ready(ref_forward(x2, *params, stride=stride))
    out2 = jax.block_until_ready(
        tcn_forward(x2, *params, stride=stride, compute_dtype=jnp.float32,
                    row_target=512))
    np.testing.assert_allclose(np.asarray(out2), np.asarray(ref2),
                               rtol=1e-4, atol=1e-4)

    # ---- case 3: per-tap value-accumulation path (used when C_in >= 128) ----
    out3 = jax.block_until_ready(
        tcn_forward(x, *params, stride=stride, compute_dtype=jnp.float32,
                    fold_taps=False))
    np.testing.assert_allclose(np.asarray(out3), np.asarray(ref),
                               rtol=1e-4, atol=1e-4)

    # ---- case 4: bf16 operands + bf16 output (default HBM-bound path) ----
    out4 = jax.block_until_ready(
        tcn_forward(x, *params, stride=stride, compute_dtype=jnp.bfloat16,
                    out_dtype=jnp.bfloat16))
    np.testing.assert_allclose(np.asarray(out4, dtype=np.float32),
                               np.asarray(ref), rtol=5e-2, atol=5e-2)

    print("KERNEL_OK")
</pallas_src>

<mosaic_0001>
module attributes {stable_mosaic.version = 11 : i64} {
  func.func @_tcn_kernel(%arg0: i32, %arg1: i32, %arg2: memref<1x384x4xf32, #tpu.memory_space<vmem>>, %arg3: memref<36x128xf32, #tpu.memory_space<vmem>>, %arg4: memref<1x128xf32, #tpu.memory_space<vmem>>, %arg5: memref<1x256x128xf32, #tpu.memory_space<vmem>>) attributes {dimension_semantics = [#tpu.dimension_semantics<parallel>, #tpu.dimension_semantics<parallel>], iteration_bounds = array<i64: 2, 1>, scalar_prefetch = 0 : i64, scratch_operands = 0 : i64, tpu.core_type = #tpu.core_type<tc>, window_params = [{transform_indices = @transform_0, window_bounds = array<i64: 1, 384, 4>}, {pipeline_mode = #tpu.pipeline_mode<synchronous>, transform_indices = @transform_1, window_bounds = array<i64: 36, 128>}, {pipeline_mode = #tpu.pipeline_mode<synchronous>, transform_indices = @transform_2, window_bounds = array<i64: 1, 128>}, {transform_indices = @transform_3, window_bounds = array<i64: 1, 256, 128>}]} {
    %c256_i32 = arith.constant 256 : i32
    %0 = arith.muli %arg1, %c256_i32 : i32
    %1 = tpu.assume_multiple %0, 256 : i32
    %c0_i32 = arith.constant 0 : i32
    %2 = arith.addi %1, %c0_i32 : i32
    %c0 = arith.constant 0 : index
    %3 = arith.index_cast %2 : i32 to index
    %c0_0 = arith.constant 0 : index
    %4 = vector.load %arg2[%c0, %3, %c0_0] : memref<1x384x4xf32, #tpu.memory_space<vmem>>, vector<1x256x4xf32>
    %5 = vector.shape_cast %4 : vector<1x256x4xf32> to vector<256x4xf32>
    %c16_i32 = arith.constant 16 : i32
    %6 = arith.addi %1, %c16_i32 : i32
    %c0_1 = arith.constant 0 : index
    %7 = arith.index_cast %6 : i32 to index
    %c0_2 = arith.constant 0 : index
    %8 = vector.load %arg2[%c0_1, %7, %c0_2] : memref<1x384x4xf32, #tpu.memory_space<vmem>>, vector<1x256x4xf32>
    %9 = vector.shape_cast %8 : vector<1x256x4xf32> to vector<256x4xf32>
    %c32_i32 = arith.constant 32 : i32
    %10 = arith.addi %1, %c32_i32 : i32
    %c0_3 = arith.constant 0 : index
    %11 = arith.index_cast %10 : i32 to index
    %c0_4 = arith.constant 0 : index
    %12 = vector.load %arg2[%c0_3, %11, %c0_4] : memref<1x384x4xf32, #tpu.memory_space<vmem>>, vector<1x256x4xf32>
    %13 = vector.shape_cast %12 : vector<1x256x4xf32> to vector<256x4xf32>
    %c48_i32 = arith.constant 48 : i32
    %14 = arith.addi %1, %c48_i32 : i32
    %c0_5 = arith.constant 0 : index
    %15 = arith.index_cast %14 : i32 to index
    %c0_6 = arith.constant 0 : index
    %16 = vector.load %arg2[%c0_5, %15, %c0_6] : memref<1x384x4xf32, #tpu.memory_space<vmem>>, vector<1x256x4xf32>
    %17 = vector.shape_cast %16 : vector<1x256x4xf32> to vector<256x4xf32>
    %c64_i32 = arith.constant 64 : i32
    %18 = arith.addi %1, %c64_i32 : i32
    %c0_7 = arith.constant 0 : index
    %19 = arith.index_cast %18 : i32 to index
    %c0_8 = arith.constant 0 : index
    %20 = vector.load %arg2[%c0_7, %19, %c0_8] : memref<1x384x4xf32, #tpu.memory_space<vmem>>, vector<1x256x4xf32>
    %21 = vector.shape_cast %20 : vector<1x256x4xf32> to vector<256x4xf32>
    %c80_i32 = arith.constant 80 : i32
    %22 = arith.addi %1, %c80_i32 : i32
    %c0_9 = arith.constant 0 : index
    %23 = arith.index_cast %22 : i32 to index
    %c0_10 = arith.constant 0 : index
    %24 = vector.load %arg2[%c0_9, %23, %c0_10] : memref<1x384x4xf32, #tpu.memory_space<vmem>>, vector<1x256x4xf32>
    %25 = vector.shape_cast %24 : vector<1x256x4xf32> to vector<256x4xf32>
    %c96_i32 = arith.constant 96 : i32
    %26 = arith.addi %1, %c96_i32 : i32
    %c0_11 = arith.constant 0 : index
    %27 = arith.index_cast %26 : i32 to index
    %c0_12 = arith.constant 0 : index
    %28 = vector.load %arg2[%c0_11, %27, %c0_12] : memref<1x384x4xf32, #tpu.memory_space<vmem>>, vector<1x256x4xf32>
    %29 = vector.shape_cast %28 : vector<1x256x4xf32> to vector<256x4xf32>
    %c112_i32 = arith.constant 112 : i32
    %30 = arith.addi %1, %c112_i32 : i32
    %c0_13 = arith.constant 0 : index
    %31 = arith.index_cast %30 : i32 to index
    %c0_14 = arith.constant 0 : index
    %32 = vector.load %arg2[%c0_13, %31, %c0_14] : memref<1x384x4xf32, #tpu.memory_space<vmem>>, vector<1x256x4xf32>
    %33 = vector.shape_cast %32 : vector<1x256x4xf32> to vector<256x4xf32>
    %c128_i32 = arith.constant 128 : i32
    %34 = arith.addi %1, %c128_i32 : i32
    %c0_15 = arith.constant 0 : index
    %35 = arith.index_cast %34 : i32 to index
    %c0_16 = arith.constant 0 : index
    %36 = vector.load %arg2[%c0_15, %35, %c0_16] : memref<1x384x4xf32, #tpu.memory_space<vmem>>, vector<1x256x4xf32>
    %37 = vector.shape_cast %36 : vector<1x256x4xf32> to vector<256x4xf32>
    %38 = tpu.concatenate %5, %9, %13, %17, %21, %25, %29, %33, %37 in 1 : vector<256x4xf32>, vector<256x4xf32>, vector<256x4xf32>, vector<256x4xf32>, vector<256x4xf32>, vector<256x4xf32>, vector<256x4xf32>, vector<256x4xf32>, vector<256x4xf32> -> vector<256x36xf32>
    %c0_17 = arith.constant 0 : index
    %c0_18 = arith.constant 0 : index
    %39 = vector.load %arg3[%c0_17, %c0_18] : memref<36x128xf32, #tpu.memory_space<vmem>>, vector<36x128xf32>
    %cst = arith.constant dense<0.000000e+00> : vector<256x128xf32>
    %40 = tpu.matmul %38, %39, %cst {dimension_numbers = #tpu.dot_dimension_numbers<[1], [0], [0], [1], [0, 0, 1, 1], [], []>} : vector<256x36xf32>, vector<36x128xf32>, vector<256x128xf32> -> vector<256x128xf32>
    %c0_19 = arith.constant 0 : index
    %c0_20 = arith.constant 0 : index
    %41 = vector.load %arg4[%c0_19, %c0_20] : memref<1x128xf32, #tpu.memory_space<vmem>>, vector<1x128xf32>
    %42 = vector.broadcast %41 : vector<1x128xf32> to vector<256x128xf32>
    %43 = arith.addf %40, %42 : vector<256x128xf32>
    %c0_21 = arith.constant 0 : index
    %c0_22 = arith.constant 0 : index
    %c0_23 = arith.constant 0 : index
    %44 = vector.load %arg5[%c0_21, %c0_22, %c0_23] : memref<1x256x128xf32, #tpu.memory_space<vmem>>, vector<1x256x128xf32>
    %45 = vector.shape_cast %44 : vector<1x256x128xf32> to vector<256x128xf32>
    %46 = vector.shape_cast %43 : vector<256x128xf32> to vector<1x256x128xf32>
    tpu.vector_store %arg5[%c0_21, %c0_22, %c0_23], %46 {strides = array<i32>} : memref<1x256x128xf32, #tpu.memory_space<vmem>>, vector<1x256x128xf32>,
    return
  }
  func.func @transform_0(%arg0: i32, %arg1: i32) -> (i32, i32, i32) {
    %c0_i32 = arith.constant 0 : i32
    %c0_i32_0 = arith.constant 0 : i32
    %c0_i32_1 = arith.constant 0 : i32
    return %arg0, %c0_i32, %c0_i32_0 : i32, i32, i32
  }
  func.func @transform_1(%arg0: i32, %arg1: i32) -> (i32, i32) {
    %c0_i32 = arith.constant 0 : i32
    %c0_i32_0 = arith.constant 0 : i32
    %c0_i32_1 = arith.constant 0 : i32
    return %c0_i32, %c0_i32_0 : i32, i32
  }
  func.func @transform_2(%arg0: i32, %arg1: i32) -> (i32, i32) {
    %c0_i32 = arith.constant 0 : i32
    %c0_i32_0 = arith.constant 0 : i32
    %c0_i32_1 = arith.constant 0 : i32
    return %c0_i32, %c0_i32_0 : i32, i32
  }
  func.func @transform_3(%arg0: i32, %arg1: i32) -> (i32, i32, i32) {
    %c0_i32 = arith.constant 0 : i32
    %c0_i32_0 = arith.constant 0 : i32
    return %arg0, %arg1, %c0_i32 : i32, i32, i32
  }
}

</mosaic_0001>

<llo_original>
// kernel: tpu_custom_call.1
$region0: #{tpu_custom_call.1}
  #allocation0 [shape = 'u32[]', space=smem, size = 0x4, offset = 0x4, fixed_abs, tag = 'smem constant byte address 0x4 - core index']
  #allocation1 [shape = 'u32[72,128]{1,0:T(1,128)}', space=vmem, size = 0x9000, scoped, tag = 'internal scratch']
  %s0 = inlined_call_operand.vmem [shape: f32[2,384,4], index: 0, kind: input, shape index: {}]
  %s1 = inlined_call_operand.vmem [shape: f32[36,128], index: 1, kind: input, shape index: {}]
  %s2 = inlined_call_operand.vmem [shape: f32[1,128], index: 2, kind: input, shape index: {}]
  %s3 = inlined_call_operand.hbm [shape: f32[2,256,128], index: 3, kind: output, shape index: {}]
  %s4 = sld [smem:[#allocation0]]
  $region45: #{tpu_custom_call.1} parent=0
    _
  %s6 = ssub.s32 1, %s4
  %s7 = scalar_select 0, %s6, %s4
  $region1: #{tpu_custom_call.1} parent=0
    #allocation2 [shape = 'u8[262144]{0}', space=vmem, size = 0x40000, scoped, tag = 'output window, operand 0']
    #allocation3 [shape = 's32[2]{0}', space=sflag, size = 0x8, scoped, tag = 'scoped memory for tpu_custom_call.1']
    %8 = vsyncpa [#allocation3], 0
    %s9 = scalar_lea.sflag [#allocation3], 1
    %10 = vsyncpa %s9, 0
    loop: start=0, step=1, limit=4
    $region2: #{tpu_custom_call.1} parent=1 // loop_pre_header
      _
    $region3: #{tpu_custom_call.1} parent=1 // loop_header
      %s12 = sphi 0, %s16
      %p13 = scmp.ge.s32.totalorder %s12, 4
      %s19 = sphi 0, %s31
      %s20 = sphi 0, %s27
      %s21 = sphi 0, %s19
      %s22 = sphi 0, %s20
      %s23 = sphi 0, %s21
      %s24 = sphi 0, %s22
      %s34 = sphi 0, %s36
      %s37 = sphi 0, %s34
      %s38 = sphi 0, %s37
      %s54 = sphi 0, %s38
      %s58 = sphi 0, %s58
      %s60 = sphi 0, %s58
      %s61 = sphi 0, %s60
      %s75 = sphi 0, %s61
      %s79 = sphi 0, %s79
      %s81 = sphi 0, %s79
      %s82 = sphi 0, %s81
      %s96 = sphi 0, %s82
      %s104 = sphi 0, %s106
      %s107 = sphi 0, %s104
      %s108 = sphi 0, %s107
      %s124 = sphi 0, %s108
    $region4: #{tpu_custom_call.1} parent=1 // loop_header_branch
      %15 = sbr.rel (%p13) target = $region8
    $region5: #{tpu_custom_call.1} parent=1 // loop_body
      %s17 = ssub.s32 %s12, 1
      %s18 = ssub.s32 %s12, 2
      %s25 = sadd.s32 1, %s20
      %p26 = scmp.ge.s32.totalorder %s25, 1
      %s27 = scalar_select %p26, 0, %s25
      %s28 = sadd.s32 1, %s19
      %s29 = scalar_select %p26, %s28, %s19
      %p30 = scmp.ge.s32.totalorder %s29, 2
      %s31 = scalar_select %p30, 0, %s29
      %s32 = ssub.s32 %s19, %s31
      %p33 = scmp.eq.s32.totalorder %s32, 0
      %s35 = sadd.s32 %s34, 1
      %s36 = scalar_select %p33, %s34, %s35
      %p39 = pneg %p33
      %p40 = scmp.eq.s32.totalorder %s12, 1
      %p41 = por %p39, %p40
      %p42 = scmp.ne.s32.totalorder %s34, %s37
      %p43 = scmp.eq.s32.totalorder %s12, 0
      %p44 = por %p42, %p43
      %p45 = scmp.ne.s32.totalorder %s34, %s37
      %p46 = scmp.eq.s32.totalorder %s17, 1
      %p47 = por %p45, %p46
      %p48 = scmp.ne.s32.totalorder %s37, %s38
      %p49 = scmp.eq.s32.totalorder %s17, 0
      %p50 = por %p48, %p49
      %p51 = scmp.ne.s32.totalorder %s37, %s38
      %p52 = scmp.eq.s32.totalorder %s18, 1
      %p53 = por %p51, %p52
      %p55 = scmp.ne.s32.totalorder %s38, %s54
      %p56 = scmp.eq.s32.totalorder %s18, 0
      %p57 = por %p55, %p56
      %s59 = sadd.s32 %s58, 1
      %p62 = scmp.eq.s32.totalorder %s12, 1
      %p63 = scmp.ne.s32.totalorder %s58, %s60
      %p64 = scmp.eq.s32.totalorder %s12, 0
      %p65 = por %p63, %p64
      %p66 = scmp.ne.s32.totalorder %s58, %s60
      %p67 = scmp.eq.s32.totalorder %s17, 1
      %p68 = por %p66, %p67
      %p69 = scmp.ne.s32.totalorder %s60, %s61
      %p70 = scmp.eq.s32.totalorder %s17, 0
      %p71 = por %p69, %p70
      %p72 = scmp.ne.s32.totalorder %s60, %s61
      %p73 = scmp.eq.s32.totalorder %s18, 1
      %p74 = por %p72, %p73
      %p76 = scmp.ne.s32.totalorder %s61, %s75
      %p77 = scmp.eq.s32.totalorder %s18, 0
      %p78 = por %p76, %p77
      %s80 = sadd.s32 %s79, 1
      %p83 = scmp.eq.s32.totalorder %s12, 1
      %p84 = scmp.ne.s32.totalorder %s79, %s81
      %p85 = scmp.eq.s32.totalorder %s12, 0
      %p86 = por %p84, %p85
      %p87 = scmp.ne.s32.totalorder %s79, %s81
      %p88 = scmp.eq.s32.totalorder %s17, 1
      %p89 = por %p87, %p88
      %p90 = scmp.ne.s32.totalorder %s81, %s82
      %p91 = scmp.eq.s32.totalorder %s17, 0
      %p92 = por %p90, %p91
      %p93 = scmp.ne.s32.totalorder %s81, %s82
      %p94 = scmp.eq.s32.totalorder %s18, 1
      %p95 = por %p93, %p94
      %p97 = scmp.ne.s32.totalorder %s82, %s96
      %p98 = scmp.eq.s32.totalorder %s18, 0
      %p99 = por %p97, %p98
      %s100 = ssub.s32 %s19, %s31
      %s101 = ssub.s32 %s20, %s27
      %s102 = sor.u32 %s100, %s101
      %p103 = scmp.eq.s32.totalorder %s102, 0
      %s105 = sadd.s32 %s104, 1
      %s106 = scalar_select %p103, %s104, %s105
      %p109 = pneg %p103
      %p110 = scmp.eq.s32.totalorder %s12, 1
      %p111 = por %p109, %p110
      %p112 = scmp.ne.s32.totalorder %s104, %s107
      %p113 = scmp.eq.s32.totalorder %s12, 0
      %p114 = por %p112, %p113
      %p115 = scmp.ne.s32.totalorder %s104, %s107
      %p116 = scmp.eq.s32.totalorder %s17, 1
      %p117 = por %p115, %p116
      %p118 = scmp.ne.s32.totalorder %s107, %s108
      %p119 = scmp.eq.s32.totalorder %s17, 0
      %p120 = por %p118, %p119
      %p121 = scmp.ne.s32.totalorder %s107, %s108
      %p122 = scmp.eq.s32.totalorder %s18, 1
      %p123 = por %p121, %p122
      %p125 = scmp.ne.s32.totalorder %s108, %s124
      %p126 = scmp.eq.s32.totalorder %s18, 0
      %p127 = por %p125, %p126
      %p128 = scmp.le.s32.totalorder 1, %s12
      %p129 = scmp.lt.s32.totalorder %s12, 3
      %p130 = pnand %p128, %p129
      %p131 = pneg %p130
      // Predicated region
      $region9: #{tpu_custom_call.1} parent=5 // pred_check
        _
      $region10: #{tpu_custom_call.1} parent=5 // pred_check_branch
        %133 = sbr.rel (%p130) target = $region12
      $region11: #{tpu_custom_call.1} parent=5 // pred_region
        %s134 = ssub.s32 %s12, 1
        // Predicated region
        $region13: #{tpu_custom_call.1} parent=11 // pred_check
          %p135 = pneg %p71
        $region14: #{tpu_custom_call.1} parent=11 // pred_check_branch
          %137 = sbr.rel (%p135) target = $region16
        $region15: #{tpu_custom_call.1} parent=11 // pred_region
          _
        $region16: #{tpu_custom_call.1} parent=11 // pred_fallthru
          _
        // Predicated region
        $region17: #{tpu_custom_call.1} parent=11 // pred_check
          %p138 = pneg %p92
        $region18: #{tpu_custom_call.1} parent=11 // pred_check_branch
          %140 = sbr.rel (%p138) target = $region20
        $region19: #{tpu_custom_call.1} parent=11 // pred_region
          _
        $region20: #{tpu_custom_call.1} parent=11 // pred_fallthru
          _
      $region12: #{tpu_custom_call.1} parent=5 // pred_fallthru
        _
      %p141 = scmp.lt.s32.totalorder %s12, 2
      // Predicated region
      $region21: #{tpu_custom_call.1} parent=5 // pred_check
        %p142 = pneg %p141
      $region22: #{tpu_custom_call.1} parent=5 // pred_check_branch
        %144 = sbr.rel (%p142) target = $region24
      $region23: #{tpu_custom_call.1} parent=5 // pred_region
        // Predicated region
        $region25: #{tpu_custom_call.1} parent=23 // pred_check
          %p145 = pneg %p44
        $region26: #{tpu_custom_call.1} parent=23 // pred_check_branch
          %147 = sbr.rel (%p145) target = $region28
        $region27: #{tpu_custom_call.1} parent=23 // pred_region
          %p148 = scmp.lt.s32.totalorder %s19, 1
          %s149 = scalar_select %p148, %s19, 1
          %s150 = smul.addr %s149, 48
          %s151 = smul.addr %s150, 8
          %s152 = scalar_lea.vmem %s0, %s151
        $region28: #{tpu_custom_call.1} parent=23 // pred_fallthru
          _
      $region24: #{tpu_custom_call.1} parent=5 // pred_fallthru
        _
      %p153 = scmp.le.s32.totalorder 1, %s12
      %p154 = scmp.lt.s32.totalorder %s12, 3
      %p155 = pnand %p153, %p154
      %p156 = pneg %p155
      // Predicated region
      $region29: #{tpu_custom_call.1} parent=5 // pred_check
        _
      $region30: #{tpu_custom_call.1} parent=5 // pred_check_branch
        %158 = sbr.rel (%p155) target = $region32
      $region31: #{tpu_custom_call.1} parent=5 // pred_region
        %s159 = ssub.s32 %s12, 1
        %p160 = scmp.lt.s32.totalorder %s21, 1
        %s161 = scalar_select %p160, %s21, 1
        %s162 = smul.addr %s161, 48
        %s163 = smul.addr %s162, 8
        %s164 = scalar_lea.vmem %s0, %s163
        %p165 = pneg %p50
        %p166 = pneg %p47
        %p167 = pneg %p71
        %p168 = pneg %p68
        %p169 = pneg %p92
        %p170 = pneg %p89
        %p171 = pneg %p120
        %p172 = pneg %p117
        %s173 = sand.u32 %s107, 1
        %s174 = scalar_lea.sflag [#allocation3], %s173
        %s175 = sand.u32 %s107, 1
        %s176 = smul.addr %s175, 256
        %s177 = scalar_lea.vmem [#allocation2], %s176
        %p178 = scmp.lt.s32.totalorder %s21, 1
        %s179 = scalar_select %p178, %s21, 1
        %s180 = smul.addr %s179, 48
        %s181 = smul.addr %s180, 8
        %s182 = scalar_lea.vmem %s0, %s181
        %s183 = smul.u32 32, %s22
        %s184 = smul.u32 %s22, 256
        %s185 = scalar_lea.vmem %s182, %s184
        %v186 = vld [vmem:[%s185] sm:$0xff]
        %v187 = vld [vmem:[%s185 + $0x8] sm:$0xff]
        %v188 = vld [vmem:[%s185 + $0x10] sm:$0xff]
        %v189 = vld [vmem:[%s185 + $0x18] sm:$0xff]
        %v190 = vld [vmem:[%s185 + $0x20] sm:$0xff]
        %v191 = vld [vmem:[%s185 + $0x28] sm:$0xff]
        %v192 = vld [vmem:[%s185 + $0x30] sm:$0xff]
        %v193 = vld [vmem:[%s185 + $0x38] sm:$0xff]
        %v194 = vld [vmem:[%s185 + $0x40] sm:$0xff]
        %v195 = vld [vmem:[%s185 + $0x48] sm:$0xff]
        %v196 = vld [vmem:[%s185 + $0x50] sm:$0xff]
        %v197 = vld [vmem:[%s185 + $0x58] sm:$0xff]
        %v198 = vld [vmem:[%s185 + $0x60] sm:$0xff]
        %v199 = vld [vmem:[%s185 + $0x68] sm:$0xff]
        %v200 = vld [vmem:[%s185 + $0x70] sm:$0xff]
        %v201 = vld [vmem:[%s185 + $0x78] sm:$0xff]
        %v202 = vld [vmem:[%s185 + $0x80] sm:$0xff]
        %v203 = vld [vmem:[%s185 + $0x88] sm:$0xff]
        %v204 = vld [vmem:[%s185 + $0x90] sm:$0xff]
        %v205 = vld [vmem:[%s185 + $0x98] sm:$0xff]
        %v206 = vld [vmem:[%s185 + $0xa0] sm:$0xff]
        %v207 = vld [vmem:[%s185 + $0xa8] sm:$0xff]
        %v208 = vld [vmem:[%s185 + $0xb0] sm:$0xff]
        %v209 = vld [vmem:[%s185 + $0xb8] sm:$0xff]
        %v210 = vld [vmem:[%s185 + $0xc0] sm:$0xff]
        %v211 = vld [vmem:[%s185 + $0xc8] sm:$0xff]
        %v212 = vld [vmem:[%s185 + $0xd0] sm:$0xff]
        %v213 = vld [vmem:[%s185 + $0xd8] sm:$0xff]
        %v214 = vld [vmem:[%s185 + $0xe0] sm:$0xff]
        %v215 = vld [vmem:[%s185 + $0xe8] sm:$0xff]
        %v216 = vld [vmem:[%s185 + $0xf0] sm:$0xff]
        %v217 = vld [vmem:[%s185 + $0xf8] sm:$0xff]
        %s218 = sadd.s32 %s184, 16
        %s219 = scalar_lea.vmem %s182, %s218
        %v220 = vld [vmem:[%s219] sm:$0xff]
        %v221 = vld [vmem:[%s219 + $0x8] sm:$0xff]
        %v222 = vld [vmem:[%s219 + $0x10] sm:$0xff]
        %v223 = vld [vmem:[%s219 + $0x18] sm:$0xff]
        %v224 = vld [vmem:[%s219 + $0x20] sm:$0xff]
        %v225 = vld [vmem:[%s219 + $0x28] sm:$0xff]
        %v226 = vld [vmem:[%s219 + $0x30] sm:$0xff]
        %v227 = vld [vmem:[%s219 + $0x38] sm:$0xff]
        %v228 = vld [vmem:[%s219 + $0x40] sm:$0xff]
        %v229 = vld [vmem:[%s219 + $0x48] sm:$0xff]
        %v230 = vld [vmem:[%s219 + $0x50] sm:$0xff]
        %v231 = vld [vmem:[%s219 + $0x58] sm:$0xff]
        %v232 = vld [vmem:[%s219 + $0x60] sm:$0xff]
        %v233 = vld [vmem:[%s219 + $0x68] sm:$0xff]
        %v234 = vld [vmem:[%s219 + $0x70] sm:$0xff]
        %v235 = vld [vmem:[%s219 + $0x78] sm:$0xff]
        %v236 = vld [vmem:[%s219 + $0x80] sm:$0xff]
        %v237 = vld [vmem:[%s219 + $0x88] sm:$0xff]
        %v238 = vld [vmem:[%s219 + $0x90] sm:$0xff]
        %v239 = vld [vmem:[%s219 + $0x98] sm:$0xff]
        %v240 = vld [vmem:[%s219 + $0xa0] sm:$0xff]
        %v241 = vld [vmem:[%s219 + $0xa8] sm:$0xff]
        %v242 = vld [vmem:[%s219 + $0xb0] sm:$0xff]
        %v243 = vld [vmem:[%s219 + $0xb8] sm:$0xff]
        %v244 = vld [vmem:[%s219 + $0xc0] sm:$0xff]
        %v245 = vld [vmem:[%s219 + $0xc8] sm:$0xff]
        %v246 = vld [vmem:[%s219 + $0xd0] sm:$0xff]
        %v247 = vld [vmem:[%s219 + $0xd8] sm:$0xff]
        %v248 = vld [vmem:[%s219 + $0xe0] sm:$0xff]
        %v249 = vld [vmem:[%s219 + $0xe8] sm:$0xff]
        %v250 = vld [vmem:[%s219 + $0xf0] sm:$0xff]
        %v251 = vld [vmem:[%s219 + $0xf8] sm:$0xff]
        %s252 = sadd.s32 %s184, 32
        %s253 = scalar_lea.vmem %s182, %s252
        %v254 = vld [vmem:[%s253] sm:$0xff]
        %v255 = vld [vmem:[%s253 + $0x8] sm:$0xff]
        %v256 = vld [vmem:[%s253 + $0x10] sm:$0xff]
        %v257 = vld [vmem:[%s253 + $0x18] sm:$0xff]
        %v258 = vld [vmem:[%s253 + $0x20] sm:$0xff]
        %v259 = vld [vmem:[%s253 + $0x28] sm:$0xff]
        %v260 = vld [vmem:[%s253 + $0x30] sm:$0xff]
        %v261 = vld [vmem:[%s253 + $0x38] sm:$0xff]
        %v262 = vld [vmem:[%s253 + $0x40] sm:$0xff]
        %v263 = vld [vmem:[%s253 + $0x48] sm:$0xff]
        %v264 = vld [vmem:[%s253 + $0x50] sm:$0xff]
        %v265 = vld [vmem:[%s253 + $0x58] sm:$0xff]
        %v266 = vld [vmem:[%s253 + $0x60] sm:$0xff]
        %v267 = vld [vmem:[%s253 + $0x68] sm:$0xff]
        %v268 = vld [vmem:[%s253 + $0x70] sm:$0xff]
        %v269 = vld [vmem:[%s253 + $0x78] sm:$0xff]
        %v270 = vld [vmem:[%s253 + $0x80] sm:$0xff]
        %v271 = vld [vmem:[%s253 + $0x88] sm:$0xff]
        %v272 = vld [vmem:[%s253 + $0x90] sm:$0xff]
        %v273 = vld [vmem:[%s253 + $0x98] sm:$0xff]
        %v274 = vld [vmem:[%s253 + $0xa0] sm:$0xff]
        %v275 = vld [vmem:[%s253 + $0xa8] sm:$0xff]
        %v276 = vld [vmem:[%s253 + $0xb0] sm:$0xff]
        %v277 = vld [vmem:[%s253 + $0xb8] sm:$0xff]
        %v278 = vld [vmem:[%s253 + $0xc0] sm:$0xff]
        %v279 = vld [vmem:[%s253 + $0xc8] sm:$0xff]
        %v280 = vld [vmem:[%s253 + $0xd0] sm:$0xff]
        %v281 = vld [vmem:[%s253 + $0xd8] sm:$0xff]
        %v282 = vld [vmem:[%s253 + $0xe0] sm:$0xff]
        %v283 = vld [vmem:[%s253 + $0xe8] sm:$0xff]
        %v284 = vld [vmem:[%s253 + $0xf0] sm:$0xff]
        %v285 = vld [vmem:[%s253 + $0xf8] sm:$0xff]
        %s286 = sadd.s32 %s184, 48
        %s287 = scalar_lea.vmem %s182, %s286
        %v288 = vld [vmem:[%s287] sm:$0xff]
        %v289 = vld [vmem:[%s287 + $0x8] sm:$0xff]
        %v290 = vld [vmem:[%s287 + $0x10] sm:$0xff]
        %v291 = vld [vmem:[%s287 + $0x18] sm:$0xff]
        %v292 = vld [vmem:[%s287 + $0x20] sm:$0xff]
        %v293 = vld [vmem:[%s287 + $0x28] sm:$0xff]
        %v294 = vld [vmem:[%s287 + $0x30] sm:$0xff]
        %v295 = vld [vmem:[%s287 + $0x38] sm:$0xff]
        %v296 = vld [vmem:[%s287 + $0x40] sm:$0xff]
        %v297 = vld [vmem:[%s287 + $0x48] sm:$0xff]
        %v298 = vld [vmem:[%s287 + $0x50] sm:$0xff]
        %v299 = vld [vmem:[%s287 + $0x58] sm:$0xff]
        %v300 = vld [vmem:[%s287 + $0x60] sm:$0xff]
        %v301 = vld [vmem:[%s287 + $0x68] sm:$0xff]
        %v302 = vld [vmem:[%s287 + $0x70] sm:$0xff]
        %v303 = vld [vmem:[%s287 + $0x78] sm:$0xff]
        %v304 = vld [vmem:[%s287 + $0x80] sm:$0xff]
        %v305 = vld [vmem:[%s287 + $0x88] sm:$0xff]
        %v306 = vld [vmem:[%s287 + $0x90] sm:$0xff]
        %v307 = vld [vmem:[%s287 + $0x98] sm:$0xff]
        %v308 = vld [vmem:[%s287 + $0xa0] sm:$0xff]
        %v309 = vld [vmem:[%s287 + $0xa8] sm:$0xff]
        %v310 = vld [vmem:[%s287 + $0xb0] sm:$0xff]
        %v311 = vld [vmem:[%s287 + $0xb8] sm:$0xff]
        %v312 = vld [vmem:[%s287 + $0xc0] sm:$0xff]
        %v313 = vld [vmem:[%s287 + $0xc8] sm:$0xff]
        %v314 = vld [vmem:[%s287 + $0xd0] sm:$0xff]
        %v315 = vld [vmem:[%s287 + $0xd8] sm:$0xff]
        %v316 = vld [vmem:[%s287 + $0xe0] sm:$0xff]
        %v317 = vld [vmem:[%s287 + $0xe8] sm:$0xff]
        %v318 = vld [vmem:[%s287 + $0xf0] sm:$0xff]
        %v319 = vld [vmem:[%s287 + $0xf8] sm:$0xff]
        %s320 = sadd.s32 %s184, 64
        %s321 = scalar_lea.vmem %s182, %s320
        %v322 = vld [vmem:[%s321] sm:$0xff]
        %v323 = vld [vmem:[%s321 + $0x8] sm:$0xff]
        %v324 = vld [vmem:[%s321 + $0x10] sm:$0xff]
        %v325 = vld [vmem:[%s321 + $0x18] sm:$0xff]
        %v326 = vld [vmem:[%s321 + $0x20] sm:$0xff]
        %v327 = vld [vmem:[%s321 + $0x28] sm:$0xff]
        %v328 = vld [vmem:[%s321 + $0x30] sm:$0xff]
        %v329 = vld [vmem:[%s321 + $0x38] sm:$0xff]
        %v330 = vld [vmem:[%s321 + $0x40] sm:$0xff]
        %v331 = vld [vmem:[%s321 + $0x48] sm:$0xff]
        %v332 = vld [vmem:[%s321 + $0x50] sm:$0xff]
        %v333 = vld [vmem:[%s321 + $0x58] sm:$0xff]
        %v334 = vld [vmem:[%s321 + $0x60] sm:$0xff]
        %v335 = vld [vmem:[%s321 + $0x68] sm:$0xff]
        %v336 = vld [vmem:[%s321 + $0x70] sm:$0xff]
        %v337 = vld [vmem:[%s321 + $0x78] sm:$0xff]
        %v338 = vld [vmem:[%s321 + $0x80] sm:$0xff]
        %v339 = vld [vmem:[%s321 + $0x88] sm:$0xff]
        %v340 = vld [vmem:[%s321 + $0x90] sm:$0xff]
        %v341 = vld [vmem:[%s321 + $0x98] sm:$0xff]
        %v342 = vld [vmem:[%s321 + $0xa0] sm:$0xff]
        %v343 = vld [vmem:[%s321 + $0xa8] sm:$0xff]
        %v344 = vld [vmem:[%s321 + $0xb0] sm:$0xff]
        %v345 = vld [vmem:[%s321 + $0xb8] sm:$0xff]
        %v346 = vld [vmem:[%s321 + $0xc0] sm:$0xff]
        %v347 = vld [vmem:[%s321 + $0xc8] sm:$0xff]
        %v348 = vld [vmem:[%s321 + $0xd0] sm:$0xff]
        %v349 = vld [vmem:[%s321 + $0xd8] sm:$0xff]
        %v350 = vld [vmem:[%s321 + $0xe0] sm:$0xff]
        %v351 = vld [vmem:[%s321 + $0xe8] sm:$0xff]
        %v352 = vld [vmem:[%s321 + $0xf0] sm:$0xff]
        %v353 = vld [vmem:[%s321 + $0xf8] sm:$0xff]
        %s354 = sadd.s32 %s184, 80
        %s355 = scalar_lea.vmem %s182, %s354
        %v356 = vld [vmem:[%s355] sm:$0xff]
        %v357 = vld [vmem:[%s355 + $0x8] sm:$0xff]
        %v358 = vld [vmem:[%s355 + $0x10] sm:$0xff]
        %v359 = vld [vmem:[%s355 + $0x18] sm:$0xff]
        %v360 = vld [vmem:[%s355 + $0x20] sm:$0xff]
        %v361 = vld [vmem:[%s355 + $0x28] sm:$0xff]
        %v362 = vld [vmem:[%s355 + $0x30] sm:$0xff]
        %v363 = vld [vmem:[%s355 + $0x38] sm:$0xff]
        %v364 = vld [vmem:[%s355 + $0x40] sm:$0xff]
        %v365 = vld [vmem:[%s355 + $0x48] sm:$0xff]
        %v366 = vld [vmem:[%s355 + $0x50] sm:$0xff]
        %v367 = vld [vmem:[%s355 + $0x58] sm:$0xff]
        %v368 = vld [vmem:[%s355 + $0x60] sm:$0xff]
        %v369 = vld [vmem:[%s355 + $0x68] sm:$0xff]
        %v370 = vld [vmem:[%s355 + $0x70] sm:$0xff]
        %v371 = vld [vmem:[%s355 + $0x78] sm:$0xff]
        %v372 = vld [vmem:[%s355 + $0x80] sm:$0xff]
        %v373 = vld [vmem:[%s355 + $0x88] sm:$0xff]
        %v374 = vld [vmem:[%s355 + $0x90] sm:$0xff]
        %v375 = vld [vmem:[%s355 + $0x98] sm:$0xff]
        %v376 = vld [vmem:[%s355 + $0xa0] sm:$0xff]
        %v377 = vld [vmem:[%s355 + $0xa8] sm:$0xff]
        %v378 = vld [vmem:[%s355 + $0xb0] sm:$0xff]
        %v379 = vld [vmem:[%s355 + $0xb8] sm:$0xff]
        %v380 = vld [vmem:[%s355 + $0xc0] sm:$0xff]
        %v381 = vld [vmem:[%s355 + $0xc8] sm:$0xff]
        %v382 = vld [vmem:[%s355 + $0xd0] sm:$0xff]
        %v383 = vld [vmem:[%s355 + $0xd8] sm:$0xff]
        %v384 = vld [vmem:[%s355 + $0xe0] sm:$0xff]
        %v385 = vld [vmem:[%s355 + $0xe8] sm:$0xff]
        %v386 = vld [vmem:[%s355 + $0xf0] sm:$0xff]
        %v387 = vld [vmem:[%s355 + $0xf8] sm:$0xff]
        %s388 = sadd.s32 %s184, 96
        %s389 = scalar_lea.vmem %s182, %s388
        %v390 = vld [vmem:[%s389] sm:$0xff]
        %v391 = vld [vmem:[%s389 + $0x8] sm:$0xff]
        %v392 = vld [vmem:[%s389 + $0x10] sm:$0xff]
        %v393 = vld [vmem:[%s389 + $0x18] sm:$0xff]
        %v394 = vld [vmem:[%s389 + $0x20] sm:$0xff]
        %v395 = vld [vmem:[%s389 + $0x28] sm:$0xff]
        %v396 = vld [vmem:[%s389 + $0x30] sm:$0xff]
        %v397 = vld [vmem:[%s389 + $0x38] sm:$0xff]
        %v398 = vld [vmem:[%s389 + $0x40] sm:$0xff]
        %v399 = vld [vmem:[%s389 + $0x48] sm:$0xff]
        %v400 = vld [vmem:[%s389 + $0x50] sm:$0xff]
        %v401 = vld [vmem:[%s389 + $0x58] sm:$0xff]
        %v402 = vld [vmem:[%s389 + $0x60] sm:$0xff]
        %v403 = vld [vmem:[%s389 + $0x68] sm:$0xff]
        %v404 = vld [vmem:[%s389 + $0x70] sm:$0xff]
        %v405 = vld [vmem:[%s389 + $0x78] sm:$0xff]
        %v406 = vld [vmem:[%s389 + $0x80] sm:$0xff]
        %v407 = vld [vmem:[%s389 + $0x88] sm:$0xff]
        %v408 = vld [vmem:[%s389 + $0x90] sm:$0xff]
        %v409 = vld [vmem:[%s389 + $0x98] sm:$0xff]
        %v410 = vld [vmem:[%s389 + $0xa0] sm:$0xff]
        %v411 = vld [vmem:[%s389 + $0xa8] sm:$0xff]
        %v412 = vld [vmem:[%s389 + $0xb0] sm:$0xff]
        %v413 = vld [vmem:[%s389 + $0xb8] sm:$0xff]
        %v414 = vld [vmem:[%s389 + $0xc0] sm:$0xff]
        %v415 = vld [vmem:[%s389 + $0xc8] sm:$0xff]
        %v416 = vld [vmem:[%s389 + $0xd0] sm:$0xff]
        %v417 = vld [vmem:[%s389 + $0xd8] sm:$0xff]
        %v418 = vld [vmem:[%s389 + $0xe0] sm:$0xff]
        %v419 = vld [vmem:[%s389 + $0xe8] sm:$0xff]
        %v420 = vld [vmem:[%s389 + $0xf0] sm:$0xff]
        %v421 = vld [vmem:[%s389 + $0xf8] sm:$0xff]
        %s422 = sadd.s32 %s184, 112
        %s423 = scalar_lea.vmem %s182, %s422
        %v424 = vld [vmem:[%s423] sm:$0xff]
        %v425 = vld [vmem:[%s423 + $0x8] sm:$0xff]
        %v426 = vld [vmem:[%s423 + $0x10] sm:$0xff]
        %v427 = vld [vmem:[%s423 + $0x18] sm:$0xff]
        %v428 = vld [vmem:[%s423 + $0x20] sm:$0xff]
        %v429 = vld [vmem:[%s423 + $0x28] sm:$0xff]
        %v430 = vld [vmem:[%s423 + $0x30] sm:$0xff]
        %v431 = vld [vmem:[%s423 + $0x38] sm:$0xff]
        %v432 = vld [vmem:[%s423 + $0x40] sm:$0xff]
        %v433 = vld [vmem:[%s423 + $0x48] sm:$0xff]
        %v434 = vld [vmem:[%s423 + $0x50] sm:$0xff]
        %v435 = vld [vmem:[%s423 + $0x58] sm:$0xff]
        %v436 = vld [vmem:[%s423 + $0x60] sm:$0xff]
        %v437 = vld [vmem:[%s423 + $0x68] sm:$0xff]
        %v438 = vld [vmem:[%s423 + $0x70] sm:$0xff]
        %v439 = vld [vmem:[%s423 + $0x78] sm:$0xff]
        %v440 = vld [vmem:[%s423 + $0x80] sm:$0xff]
        %v441 = vld [vmem:[%s423 + $0x88] sm:$0xff]
        %v442 = vld [vmem:[%s423 + $0x90] sm:$0xff]
        %v443 = vld [vmem:[%s423 + $0x98] sm:$0xff]
        %v444 = vld [vmem:[%s423 + $0xa0] sm:$0xff]
        %v445 = vld [vmem:[%s423 + $0xa8] sm:$0xff]
        %v446 = vld [vmem:[%s423 + $0xb0] sm:$0xff]
        %v447 = vld [vmem:[%s423 + $0xb8] sm:$0xff]
        %v448 = vld [vmem:[%s423 + $0xc0] sm:$0xff]
        %v449 = vld [vmem:[%s423 + $0xc8] sm:$0xff]
        %v450 = vld [vmem:[%s423 + $0xd0] sm:$0xff]
        %v451 = vld [vmem:[%s423 + $0xd8] sm:$0xff]
        %v452 = vld [vmem:[%s423 + $0xe0] sm:$0xff]
        %v453 = vld [vmem:[%s423 + $0xe8] sm:$0xff]
        %v454 = vld [vmem:[%s423 + $0xf0] sm:$0xff]
        %v455 = vld [vmem:[%s423 + $0xf8] sm:$0xff]
        %s456 = sadd.s32 %s184, 128
        %s457 = scalar_lea.vmem %s182, %s456
        %v458 = vld [vmem:[%s457] sm:$0xff]
        %v459 = vld [vmem:[%s457 + $0x8] sm:$0xff]
        %v460 = vld [vmem:[%s457 + $0x10] sm:$0xff]
        %v461 = vld [vmem:[%s457 + $0x18] sm:$0xff]
        %v462 = vld [vmem:[%s457 + $0x20] sm:$0xff]
        %v463 = vld [vmem:[%s457 + $0x28] sm:$0xff]
        %v464 = vld [vmem:[%s457 + $0x30] sm:$0xff]
        %v465 = vld [vmem:[%s457 + $0x38] sm:$0xff]
        %v466 = vld [vmem:[%s457 + $0x40] sm:$0xff]
        %v467 = vld [vmem:[%s457 + $0x48] sm:$0xff]
        %v468 = vld [vmem:[%s457 + $0x50] sm:$0xff]
        %v469 = vld [vmem:[%s457 + $0x58] sm:$0xff]
        %v470 = vld [vmem:[%s457 + $0x60] sm:$0xff]
        %v471 = vld [vmem:[%s457 + $0x68] sm:$0xff]
        %v472 = vld [vmem:[%s457 + $0x70] sm:$0xff]
        %v473 = vld [vmem:[%s457 + $0x78] sm:$0xff]
        %v474 = vld [vmem:[%s457 + $0x80] sm:$0xff]
        %v475 = vld [vmem:[%s457 + $0x88] sm:$0xff]
        %v476 = vld [vmem:[%s457 + $0x90] sm:$0xff]
        %v477 = vld [vmem:[%s457 + $0x98] sm:$0xff]
        %v478 = vld [vmem:[%s457 + $0xa0] sm:$0xff]
        %v479 = vld [vmem:[%s457 + $0xa8] sm:$0xff]
        %v480 = vld [vmem:[%s457 + $0xb0] sm:$0xff]
        %v481 = vld [vmem:[%s457 + $0xb8] sm:$0xff]
        %v482 = vld [vmem:[%s457 + $0xc0] sm:$0xff]
        %v483 = vld [vmem:[%s457 + $0xc8] sm:$0xff]
        %v484 = vld [vmem:[%s457 + $0xd0] sm:$0xff]
        %v485 = vld [vmem:[%s457 + $0xd8] sm:$0xff]
        %v486 = vld [vmem:[%s457 + $0xe0] sm:$0xff]
        %v487 = vld [vmem:[%s457 + $0xe8] sm:$0xff]
        %v488 = vld [vmem:[%s457 + $0xf0] sm:$0xff]
        %v489 = vld [vmem:[%s457 + $0xf8] sm:$0xff]
        %522 = vrot.lane.b32.xlu0 %v220, 4
        %v523 = vpop.permute.xlu0 %522
        %524 = vrot.lane.b32.xlu0 %v221, 4
        %v525 = vpop.permute.xlu0 %524
        %526 = vrot.lane.b32.xlu0 %v222, 4
        %v527 = vpop.permute.xlu0 %526
        %528 = vrot.lane.b32.xlu0 %v223, 4
        %v529 = vpop.permute.xlu0 %528
        %530 = vrot.lane.b32.xlu0 %v224, 4
        %v531 = vpop.permute.xlu0 %530
        %532 = vrot.lane.b32.xlu0 %v225, 4
        %v533 = vpop.permute.xlu0 %532
        %534 = vrot.lane.b32.xlu0 %v226, 4
        %v535 = vpop.permute.xlu0 %534
        %536 = vrot.lane.b32.xlu0 %v227, 4
        %v537 = vpop.permute.xlu0 %536
        %538 = vrot.lane.b32.xlu0 %v228, 4
        %v539 = vpop.permute.xlu0 %538
        %540 = vrot.lane.b32.xlu0 %v229, 4
        %v541 = vpop.permute.xlu0 %540
        %542 = vrot.lane.b32.xlu0 %v230, 4
        %v543 = vpop.permute.xlu0 %542
        %544 = vrot.lane.b32.xlu0 %v231, 4
        %v545 = vpop.permute.xlu0 %544
        %546 = vrot.lane.b32.xlu0 %v232, 4
        %v547 = vpop.permute.xlu0 %546
        %548 = vrot.lane.b32.xlu0 %v233, 4
        %v549 = vpop.permute.xlu0 %548
        %550 = vrot.lane.b32.xlu0 %v234, 4
        %v551 = vpop.permute.xlu0 %550
        %552 = vrot.lane.b32.xlu0 %v235, 4
        %v553 = vpop.permute.xlu0 %552
        %554 = vrot.lane.b32.xlu0 %v236, 4
        %v555 = vpop.permute.xlu0 %554
        %556 = vrot.lane.b32.xlu0 %v237, 4
        %v557 = vpop.permute.xlu0 %556
        %558 = vrot.lane.b32.xlu0 %v238, 4
        %v559 = vpop.permute.xlu0 %558
        %560 = vrot.lane.b32.xlu0 %v239, 4
        %v561 = vpop.permute.xlu0 %560
        %562 = vrot.lane.b32.xlu0 %v240, 4
        %v563 = vpop.permute.xlu0 %562
        %564 = vrot.lane.b32.xlu0 %v241, 4
        %v565 = vpop.permute.xlu0 %564
        %566 = vrot.lane.b32.xlu0 %v242, 4
        %v567 = vpop.permute.xlu0 %566
        %568 = vrot.lane.b32.xlu0 %v243, 4
        %v569 = vpop.permute.xlu0 %568
        %570 = vrot.lane.b32.xlu0 %v244, 4
        %v571 = vpop.permute.xlu0 %570
        %572 = vrot.lane.b32.xlu0 %v245, 4
        %v573 = vpop.permute.xlu0 %572
        %574 = vrot.lane.b32.xlu0 %v246, 4
        %v575 = vpop.permute.xlu0 %574
        %576 = vrot.lane.b32.xlu0 %v247, 4
        %v577 = vpop.permute.xlu0 %576
        %578 = vrot.lane.b32.xlu0 %v248, 4
        %v579 = vpop.permute.xlu0 %578
        %580 = vrot.lane.b32.xlu0 %v249, 4
        %v581 = vpop.permute.xlu0 %580
        %582 = vrot.lane.b32.xlu0 %v250, 4
        %v583 = vpop.permute.xlu0 %582
        %584 = vrot.lane.b32.xlu0 %v251, 4
        %v585 = vpop.permute.xlu0 %584
        %650 = vrot.lane.b32.xlu0 %v254, 8
        %v651 = vpop.permute.xlu0 %650
        %652 = vrot.lane.b32.xlu0 %v255, 8
        %v653 = vpop.permute.xlu0 %652
        %654 = vrot.lane.b32.xlu0 %v256, 8
        %v655 = vpop.permute.xlu0 %654
        %656 = vrot.lane.b32.xlu0 %v257, 8
        %v657 = vpop.permute.xlu0 %656
        %658 = vrot.lane.b32.xlu0 %v258, 8
        %v659 = vpop.permute.xlu0 %658
        %660 = vrot.lane.b32.xlu0 %v259, 8
        %v661 = vpop.permute.xlu0 %660
        %662 = vrot.lane.b32.xlu0 %v260, 8
        %v663 = vpop.permute.xlu0 %662
        %664 = vrot.lane.b32.xlu0 %v261, 8
        %v665 = vpop.permute.xlu0 %664
        %666 = vrot.lane.b32.xlu0 %v262, 8
        %v667 = vpop.permute.xlu0 %666
        %668 = vrot.lane.b32.xlu0 %v263, 8
        %v669 = vpop.permute.xlu0 %668
        %670 = vrot.lane.b32.xlu0 %v264, 8
        %v671 = vpop.permute.xlu0 %670
        %672 = vrot.lane.b32.xlu0 %v265, 8
        %v673 = vpop.permute.xlu0 %672
        %674 = vrot.lane.b32.xlu0 %v266, 8
        %v675 = vpop.permute.xlu0 %674
        %676 = vrot.lane.b32.xlu0 %v267, 8
        %v677 = vpop.permute.xlu0 %676
        %678 = vrot.lane.b32.xlu0 %v268, 8
        %v679 = vpop.permute.xlu0 %678
        %680 = vrot.lane.b32.xlu0 %v269, 8
        %v681 = vpop.permute.xlu0 %680
        %682 = vrot.lane.b32.xlu0 %v270, 8
        %v683 = vpop.permute.xlu0 %682
        %684 = vrot.lane.b32.xlu0 %v271, 8
        %v685 = vpop.permute.xlu0 %684
        %686 = vrot.lane.b32.xlu0 %v272, 8
        %v687 = vpop.permute.xlu0 %686
        %688 = vrot.lane.b32.xlu0 %v273, 8
        %v689 = vpop.permute.xlu0 %688
        %690 = vrot.lane.b32.xlu0 %v274, 8
        %v691 = vpop.permute.xlu0 %690
        %692 = vrot.lane.b32.xlu0 %v275, 8
        %v693 = vpop.permute.xlu0 %692
        %694 = vrot.lane.b32.xlu0 %v276, 8
        %v695 = vpop.permute.xlu0 %694
        %696 = vrot.lane.b32.xlu0 %v277, 8
        %v697 = vpop.permute.xlu0 %696
        %698 = vrot.lane.b32.xlu0 %v278, 8
        %v699 = vpop.permute.xlu0 %698
        %700 = vrot.lane.b32.xlu0 %v279, 8
        %v701 = vpop.permute.xlu0 %700
        %702 = vrot.lane.b32.xlu0 %v280, 8
        %v703 = vpop.permute.xlu0 %702
        %704 = vrot.lane.b32.xlu0 %v281, 8
        %v705 = vpop.permute.xlu0 %704
        %706 = vrot.lane.b32.xlu0 %v282, 8
        %v707 = vpop.permute.xlu0 %706
        %708 = vrot.lane.b32.xlu0 %v283, 8
        %v709 = vpop.permute.xlu0 %708
        %710 = vrot.lane.b32.xlu0 %v284, 8
        %v711 = vpop.permute.xlu0 %710
        %712 = vrot.lane.b32.xlu0 %v285, 8
        %v713 = vpop.permute.xlu0 %712
        %778 = vrot.lane.b32.xlu0 %v288, 12
        %v779 = vpop.permute.xlu0 %778
        %780 = vrot.lane.b32.xlu0 %v289, 12
        %v781 = vpop.permute.xlu0 %780
        %782 = vrot.lane.b32.xlu0 %v290, 12
        %v783 = vpop.permute.xlu0 %782
        %784 = vrot.lane.b32.xlu0 %v291, 12
        %v785 = vpop.permute.xlu0 %784
        %786 = vrot.lane.b32.xlu0 %v292, 12
        %v787 = vpop.permute.xlu0 %786
        %788 = vrot.lane.b32.xlu0 %v293, 12
        %v789 = vpop.permute.xlu0 %788
        %790 = vrot.lane.b32.xlu0 %v294, 12
        %v791 = vpop.permute.xlu0 %790
        %792 = vrot.lane.b32.xlu0 %v295, 12
        %v793 = vpop.permute.xlu0 %792
        %794 = vrot.lane.b32.xlu0 %v296, 12
        %v795 = vpop.permute.xlu0 %794
        %796 = vrot.lane.b32.xlu0 %v297, 12
        %v797 = vpop.permute.xlu0 %796
        %798 = vrot.lane.b32.xlu0 %v298, 12
        %v799 = vpop.permute.xlu0 %798
        %800 = vrot.lane.b32.xlu0 %v299, 12
        %v801 = vpop.permute.xlu0 %800
        %802 = vrot.lane.b32.xlu0 %v300, 12
        %v803 = vpop.permute.xlu0 %802
        %804 = vrot.lane.b32.xlu0 %v301, 12
        %v805 = vpop.permute.xlu0 %804
        %806 = vrot.lane.b32.xlu0 %v302, 12
        %v807 = vpop.permute.xlu0 %806
        %808 = vrot.lane.b32.xlu0 %v303, 12
        %v809 = vpop.permute.xlu0 %808
        %810 = vrot.lane.b32.xlu0 %v304, 12
        %v811 = vpop.permute.xlu0 %810
        %812 = vrot.lane.b32.xlu0 %v305, 12
        %v813 = vpop.permute.xlu0 %812
        %814 = vrot.lane.b32.xlu0 %v306, 12
        %v815 = vpop.permute.xlu0 %814
        %816 = vrot.lane.b32.xlu0 %v307, 12
        %v817 = vpop.permute.xlu0 %816
        %818 = vrot.lane.b32.xlu0 %v308, 12
        %v819 = vpop.permute.xlu0 %818
        %820 = vrot.lane.b32.xlu0 %v309, 12
        %v821 = vpop.permute.xlu0 %820
        %822 = vrot.lane.b32.xlu0 %v310, 12
        %v823 = vpop.permute.xlu0 %822
        %824 = vrot.lane.b32.xlu0 %v311, 12
        %v825 = vpop.permute.xlu0 %824
        %826 = vrot.lane.b32.xlu0 %v312, 12
        %v827 = vpop.permute.xlu0 %826
        %828 = vrot.lane.b32.xlu0 %v313, 12
        %v829 = vpop.permute.xlu0 %828
        %830 = vrot.lane.b32.xlu0 %v314, 12
        %v831 = vpop.permute.xlu0 %830
        %832 = vrot.lane.b32.xlu0 %v315, 12
        %v833 = vpop.permute.xlu0 %832
        %834 = vrot.lane.b32.xlu0 %v316, 12
        %v835 = vpop.permute.xlu0 %834
        %836 = vrot.lane.b32.xlu0 %v317, 12
        %v837 = vpop.permute.xlu0 %836
        %838 = vrot.lane.b32.xlu0 %v318, 12
        %v839 = vpop.permute.xlu0 %838
        %840 = vrot.lane.b32.xlu0 %v319, 12
        %v841 = vpop.permute.xlu0 %840
        %906 = vrot.lane.b32.xlu0 %v322, 16
        %v907 = vpop.permute.xlu0 %906
        %908 = vrot.lane.b32.xlu0 %v323, 16
        %v909 = vpop.permute.xlu0 %908
        %910 = vrot.lane.b32.xlu0 %v324, 16
        %v911 = vpop.permute.xlu0 %910
        %912 = vrot.lane.b32.xlu0 %v325, 16
        %v913 = vpop.permute.xlu0 %912
        %914 = vrot.lane.b32.xlu0 %v326, 16
        %v915 = vpop.permute.xlu0 %914
        %916 = vrot.lane.b32.xlu0 %v327, 16
        %v917 = vpop.permute.xlu0 %916
        %918 = vrot.lane.b32.xlu0 %v328, 16
        %v919 = vpop.permute.xlu0 %918
        %920 = vrot.lane.b32.xlu0 %v329, 16
        %v921 = vpop.permute.xlu0 %920
        %922 = vrot.lane.b32.xlu0 %v330, 16
        %v923 = vpop.permute.xlu0 %922
        %924 = vrot.lane.b32.xlu0 %v331, 16
        %v925 = vpop.permute.xlu0 %924
        %926 = vrot.lane.b32.xlu0 %v332, 16
        %v927 = vpop.permute.xlu0 %926
        %928 = vrot.lane.b32.xlu0 %v333, 16
        %v929 = vpop.permute.xlu0 %928
        %930 = vrot.lane.b32.xlu0 %v334, 16
        %v931 = vpop.permute.xlu0 %930
        %932 = vrot.lane.b32.xlu0 %v335, 16
        %v933 = vpop.permute.xlu0 %932
        %934 = vrot.lane.b32.xlu0 %v336, 16
        %v935 = vpop.permute.xlu0 %934
        %936 = vrot.lane.b32.xlu0 %v337, 16
        %v937 = vpop.permute.xlu0 %936
        %938 = vrot.lane.b32.xlu0 %v338, 16
        %v939 = vpop.permute.xlu0 %938
        %940 = vrot.lane.b32.xlu0 %v339, 16
        %v941 = vpop.permute.xlu0 %940
        %942 = vrot.lane.b32.xlu0 %v340, 16
        %v943 = vpop.permute.xlu0 %942
        %944 = vrot.lane.b32.xlu0 %v341, 16
        %v945 = vpop.permute.xlu0 %944
        %946 = vrot.lane.b32.xlu0 %v342, 16
        %v947 = vpop.permute.xlu0 %946
        %948 = vrot.lane.b32.xlu0 %v343, 16
        %v949 = vpop.permute.xlu0 %948
        %950 = vrot.lane.b32.xlu0 %v344, 16
        %v951 = vpop.permute.xlu0 %950
        %952 = vrot.lane.b32.xlu0 %v345, 16
        %v953 = vpop.permute.xlu0 %952
        %954 = vrot.lane.b32.xlu0 %v346, 16
        %v955 = vpop.permute.xlu0 %954
        %956 = vrot.lane.b32.xlu0 %v347, 16
        %v957 = vpop.permute.xlu0 %956
        %958 = vrot.lane.b32.xlu0 %v348, 16
        %v959 = vpop.permute.xlu0 %958
        %960 = vrot.lane.b32.xlu0 %v349, 16
        %v961 = vpop.permute.xlu0 %960
        %962 = vrot.lane.b32.xlu0 %v350, 16
        %v963 = vpop.permute.xlu0 %962
        %964 = vrot.lane.b32.xlu0 %v351, 16
        %v965 = vpop.permute.xlu0 %964
        %966 = vrot.lane.b32.xlu0 %v352, 16
        %v967 = vpop.permute.xlu0 %966
        %968 = vrot.lane.b32.xlu0 %v353, 16
        %v969 = vpop.permute.xlu0 %968
        %1034 = vrot.lane.b32.xlu0 %v356, 20
        %v1035 = vpop.permute.xlu0 %1034
        %1036 = vrot.lane.b32.xlu0 %v357, 20
        %v1037 = vpop.permute.xlu0 %1036
        %1038 = vrot.lane.b32.xlu0 %v358, 20
        %v1039 = vpop.permute.xlu0 %1038
        %1040 = vrot.lane.b32.xlu0 %v359, 20
        %v1041 = vpop.permute.xlu0 %1040
        %1042 = vrot.lane.b32.xlu0 %v360, 20
        %v1043 = vpop.permute.xlu0 %1042
        %1044 = vrot.lane.b32.xlu0 %v361, 20
        %v1045 = vpop.permute.xlu0 %1044
        %1046 = vrot.lane.b32.xlu0 %v362, 20
        %v1047 = vpop.permute.xlu0 %1046
        %1048 = vrot.lane.b32.xlu0 %v363, 20
        %v1049 = vpop.permute.xlu0 %1048
        %1050 = vrot.lane.b32.xlu0 %v364, 20
        %v1051 = vpop.permute.xlu0 %1050
        %1052 = vrot.lane.b32.xlu0 %v365, 20
        %v1053 = vpop.permute.xlu0 %1052
        %1054 = vrot.lane.b32.xlu0 %v366, 20
        %v1055 = vpop.permute.xlu0 %1054
        %1056 = vrot.lane.b32.xlu0 %v367, 20
        %v1057 = vpop.permute.xlu0 %1056
        %1058 = vrot.lane.b32.xlu0 %v368, 20
        %v1059 = vpop.permute.xlu0 %1058
        %1060 = vrot.lane.b32.xlu0 %v369, 20
        %v1061 = vpop.permute.xlu0 %1060
        %1062 = vrot.lane.b32.xlu0 %v370, 20
        %v1063 = vpop.permute.xlu0 %1062
        %1064 = vrot.lane.b32.xlu0 %v371, 20
        %v1065 = vpop.permute.xlu0 %1064
        %1066 = vrot.lane.b32.xlu0 %v372, 20
        %v1067 = vpop.permute.xlu0 %1066
        %1068 = vrot.lane.b32.xlu0 %v373, 20
        %v1069 = vpop.permute.xlu0 %1068
        %1070 = vrot.lane.b32.xlu0 %v374, 20
        %v1071 = vpop.permute.xlu0 %1070
        %1072 = vrot.lane.b32.xlu0 %v375, 20
        %v1073 = vpop.permute.xlu0 %1072
        %1074 = vrot.lane.b32.xlu0 %v376, 20
        %v1075 = vpop.permute.xlu0 %1074
        %1076 = vrot.lane.b32.xlu0 %v377, 20
        %v1077 = vpop.permute.xlu0 %1076
        %1078 = vrot.lane.b32.xlu0 %v378, 20
        %v1079 = vpop.permute.xlu0 %1078
        %1080 = vrot.lane.b32.xlu0 %v379, 20
        %v1081 = vpop.permute.xlu0 %1080
        %1082 = vrot.lane.b32.xlu0 %v380, 20
        %v1083 = vpop.permute.xlu0 %1082
        %1084 = vrot.lane.b32.xlu0 %v381, 20
        %v1085 = vpop.permute.xlu0 %1084
        %1086 = vrot.lane.b32.xlu0 %v382, 20
        %v1087 = vpop.permute.xlu0 %1086
        %1088 = vrot.lane.b32.xlu0 %v383, 20
        %v1089 = vpop.permute.xlu0 %1088
        %1090 = vrot.lane.b32.xlu0 %v384, 20
        %v1091 = vpop.permute.xlu0 %1090
        %1092 = vrot.lane.b32.xlu0 %v385, 20
        %v1093 = vpop.permute.xlu0 %1092
        %1094 = vrot.lane.b32.xlu0 %v386, 20
        %v1095 = vpop.permute.xlu0 %1094
        %1096 = vrot.lane.b32.xlu0 %v387, 20
        %v1097 = vpop.permute.xlu0 %1096
        %1162 = vrot.lane.b32.xlu0 %v390, 24
        %v1163 = vpop.permute.xlu0 %1162
        %1164 = vrot.lane.b32.xlu0 %v391, 24
        %v1165 = vpop.permute.xlu0 %1164
        %1166 = vrot.lane.b32.xlu0 %v392, 24
        %v1167 = vpop.permute.xlu0 %1166
        %1168 = vrot.lane.b32.xlu0 %v393, 24
        %v1169 = vpop.permute.xlu0 %1168
        %1170 = vrot.lane.b32.xlu0 %v394, 24
        %v1171 = vpop.permute.xlu0 %1170
        %1172 = vrot.lane.b32.xlu0 %v395, 24
        %v1173 = vpop.permute.xlu0 %1172
        %1174 = vrot.lane.b32.xlu0 %v396, 24
        %v1175 = vpop.permute.xlu0 %1174
        %1176 = vrot.lane.b32.xlu0 %v397, 24
        %v1177 = vpop.permute.xlu0 %1176
        %1178 = vrot.lane.b32.xlu0 %v398, 24
        %v1179 = vpop.permute.xlu0 %1178
        %1180 = vrot.lane.b32.xlu0 %v399, 24
        %v1181 = vpop.permute.xlu0 %1180
        %1182 = vrot.lane.b32.xlu0 %v400, 24
        %v1183 = vpop.permute.xlu0 %1182
        %1184 = vrot.lane.b32.xlu0 %v401, 24
        %v1185 = vpop.permute.xlu0 %1184
        %1186 = vrot.lane.b32.xlu0 %v402, 24
        %v1187 = vpop.permute.xlu0 %1186
        %1188 = vrot.lane.b32.xlu0 %v403, 24
        %v1189 = vpop.permute.xlu0 %1188
        %1190 = vrot.lane.b32.xlu0 %v404, 24
        %v1191 = vpop.permute.xlu0 %1190
        %1192 = vrot.lane.b32.xlu0 %v405, 24
        %v1193 = vpop.permute.xlu0 %1192
        %1194 = vrot.lane.b32.xlu0 %v406, 24
        %v1195 = vpop.permute.xlu0 %1194
        %1196 = vrot.lane.b32.xlu0 %v407, 24
        %v1197 = vpop.permute.xlu0 %1196
        %1198 = vrot.lane.b32.xlu0 %v408, 24
        %v1199 = vpop.permute.xlu0 %1198
        %1200 = vrot.lane.b32.xlu0 %v409, 24
        %v1201 = vpop.permute.xlu0 %1200
        %1202 = vrot.lane.b32.xlu0 %v410, 24
        %v1203 = vpop.permute.xlu0 %1202
        %1204 = vrot.lane.b32.xlu0 %v411, 24
        %v1205 = vpop.permute.xlu0 %1204
        %1206 = vrot.lane.b32.xlu0 %v412, 24
        %v1207 = vpop.permute.xlu0 %1206
        %1208 = vrot.lane.b32.xlu0 %v413, 24
        %v1209 = vpop.permute.xlu0 %1208
        %1210 = vrot.lane.b32.xlu0 %v414, 24
        %v1211 = vpop.permute.xlu0 %1210
        %1212 = vrot.lane.b32.xlu0 %v415, 24
        %v1213 = vpop.permute.xlu0 %1212
        %1214 = vrot.lane.b32.xlu0 %v416, 24
        %v1215 = vpop.permute.xlu0 %1214
        %1216 = vrot.lane.b32.xlu0 %v417, 24
        %v1217 = vpop.permute.xlu0 %1216
        %1218 = vrot.lane.b32.xlu0 %v418, 24
        %v1219 = vpop.permute.xlu0 %1218
        %1220 = vrot.lane.b32.xlu0 %v419, 24
        %v1221 = vpop.permute.xlu0 %1220
        %1222 = vrot.lane.b32.xlu0 %v420, 24
        %v1223 = vpop.permute.xlu0 %1222
        %1224 = vrot.lane.b32.xlu0 %v421, 24
        %v1225 = vpop.permute.xlu0 %1224
        %1290 = vrot.lane.b32.xlu0 %v424, 28
        %v1291 = vpop.permute.xlu0 %1290
        %1292 = vrot.lane.b32.xlu0 %v425, 28
        %v1293 = vpop.permute.xlu0 %1292
        %1294 = vrot.lane.b32.xlu0 %v426, 28
        %v1295 = vpop.permute.xlu0 %1294
        %1296 = vrot.lane.b32.xlu0 %v427, 28
        %v1297 = vpop.permute.xlu0 %1296
        %1298 = vrot.lane.b32.xlu0 %v428, 28
        %v1299 = vpop.permute.xlu0 %1298
        %1300 = vrot.lane.b32.xlu0 %v429, 28
        %v1301 = vpop.permute.xlu0 %1300
        %1302 = vrot.lane.b32.xlu0 %v430, 28
        %v1303 = vpop.permute.xlu0 %1302
        %1304 = vrot.lane.b32.xlu0 %v431, 28
        %v1305 = vpop.permute.xlu0 %1304
        %1306 = vrot.lane.b32.xlu0 %v432, 28
        %v1307 = vpop.permute.xlu0 %1306
        %1308 = vrot.lane.b32.xlu0 %v433, 28
        %v1309 = vpop.permute.xlu0 %1308
        %1310 = vrot.lane.b32.xlu0 %v434, 28
        %v1311 = vpop.permute.xlu0 %1310
        %1312 = vrot.lane.b32.xlu0 %v435, 28
        %v1313 = vpop.permute.xlu0 %1312
        %1314 = vrot.lane.b32.xlu0 %v436, 28
        %v1315 = vpop.permute.xlu0 %1314
        %1316 = vrot.lane.b32.xlu0 %v437, 28
        %v1317 = vpop.permute.xlu0 %1316
        %1318 = vrot.lane.b32.xlu0 %v438, 28
        %v1319 = vpop.permute.xlu0 %1318
        %1320 = vrot.lane.b32.xlu0 %v439, 28
        %v1321 = vpop.permute.xlu0 %1320
        %1322 = vrot.lane.b32.xlu0 %v440, 28
        %v1323 = vpop.permute.xlu0 %1322
        %1324 = vrot.lane.b32.xlu0 %v441, 28
        %v1325 = vpop.permute.xlu0 %1324
        %1326 = vrot.lane.b32.xlu0 %v442, 28
        %v1327 = vpop.permute.xlu0 %1326
        %1328 = vrot.lane.b32.xlu0 %v443, 28
        %v1329 = vpop.permute.xlu0 %1328
        %1330 = vrot.lane.b32.xlu0 %v444, 28
        %v1331 = vpop.permute.xlu0 %1330
        %1332 = vrot.lane.b32.xlu0 %v445, 28
        %v1333 = vpop.permute.xlu0 %1332
        %1334 = vrot.lane.b32.xlu0 %v446, 28
        %v1335 = vpop.permute.xlu0 %1334
        %1336 = vrot.lane.b32.xlu0 %v447, 28
        %v1337 = vpop.permute.xlu0 %1336
        %1338 = vrot.lane.b32.xlu0 %v448, 28
        %v1339 = vpop.permute.xlu0 %1338
        %1340 = vrot.lane.b32.xlu0 %v449, 28
        %v1341 = vpop.permute.xlu0 %1340
        %1342 = vrot.lane.b32.xlu0 %v450, 28
        %v1343 = vpop.permute.xlu0 %1342
        %1344 = vrot.lane.b32.xlu0 %v451, 28
        %v1345 = vpop.permute.xlu0 %1344
        %1346 = vrot.lane.b32.xlu0 %v452, 28
        %v1347 = vpop.permute.xlu0 %1346
        %1348 = vrot.lane.b32.xlu0 %v453, 28
        %v1349 = vpop.permute.xlu0 %1348
        %1350 = vrot.lane.b32.xlu0 %v454, 28
        %v1351 = vpop.permute.xlu0 %1350
        %1352 = vrot.lane.b32.xlu0 %v455, 28
        %v1353 = vpop.permute.xlu0 %1352
        %1418 = vrot.lane.b32.xlu0 %v458, 32
        %v1419 = vpop.permute.xlu0 %1418
        %1420 = vrot.lane.b32.xlu0 %v459, 32
        %v1421 = vpop.permute.xlu0 %1420
        %1422 = vrot.lane.b32.xlu0 %v460, 32
        %v1423 = vpop.permute.xlu0 %1422
        %1424 = vrot.lane.b32.xlu0 %v461, 32
        %v1425 = vpop.permute.xlu0 %1424
        %1426 = vrot.lane.b32.xlu0 %v462, 32
        %v1427 = vpop.permute.xlu0 %1426
        %1428 = vrot.lane.b32.xlu0 %v463, 32
        %v1429 = vpop.permute.xlu0 %1428
        %1430 = vrot.lane.b32.xlu0 %v464, 32
        %v1431 = vpop.permute.xlu0 %1430
        %1432 = vrot.lane.b32.xlu0 %v465, 32
        %v1433 = vpop.permute.xlu0 %1432
        %1434 = vrot.lane.b32.xlu0 %v466, 32
        %v1435 = vpop.permute.xlu0 %1434
        %1436 = vrot.lane.b32.xlu0 %v467, 32
        %v1437 = vpop.permute.xlu0 %1436
        %1438 = vrot.lane.b32.xlu0 %v468, 32
        %v1439 = vpop.permute.xlu0 %1438
        %1440 = vrot.lane.b32.xlu0 %v469, 32
        %v1441 = vpop.permute.xlu0 %1440
        %1442 = vrot.lane.b32.xlu0 %v470, 32
        %v1443 = vpop.permute.xlu0 %1442
        %1444 = vrot.lane.b32.xlu0 %v471, 32
        %v1445 = vpop.permute.xlu0 %1444
        %1446 = vrot.lane.b32.xlu0 %v472, 32
        %v1447 = vpop.permute.xlu0 %1446
        %1448 = vrot.lane.b32.xlu0 %v473, 32
        %v1449 = vpop.permute.xlu0 %1448
        %1450 = vrot.lane.b32.xlu0 %v474, 32
        %v1451 = vpop.permute.xlu0 %1450
        %1452 = vrot.lane.b32.xlu0 %v475, 32
        %v1453 = vpop.permute.xlu0 %1452
        %1454 = vrot.lane.b32.xlu0 %v476, 32
        %v1455 = vpop.permute.xlu0 %1454
        %1456 = vrot.lane.b32.xlu0 %v477, 32
        %v1457 = vpop.permute.xlu0 %1456
        %1458 = vrot.lane.b32.xlu0 %v478, 32
        %v1459 = vpop.permute.xlu0 %1458
        %1460 = vrot.lane.b32.xlu0 %v479, 32
        %v1461 = vpop.permute.xlu0 %1460
        %1462 = vrot.lane.b32.xlu0 %v480, 32
        %v1463 = vpop.permute.xlu0 %1462
        %1464 = vrot.lane.b32.xlu0 %v481, 32
        %v1465 = vpop.permute.xlu0 %1464
        %1466 = vrot.lane.b32.xlu0 %v482, 32
        %v1467 = vpop.permute.xlu0 %1466
        %1468 = vrot.lane.b32.xlu0 %v483, 32
        %v1469 = vpop.permute.xlu0 %1468
        %1470 = vrot.lane.b32.xlu0 %v484, 32
        %v1471 = vpop.permute.xlu0 %1470
        %1472 = vrot.lane.b32.xlu0 %v485, 32
        %v1473 = vpop.permute.xlu0 %1472
        %1474 = vrot.lane.b32.xlu0 %v486, 32
        %v1475 = vpop.permute.xlu0 %1474
        %1476 = vrot.lane.b32.xlu0 %v487, 32
        %v1477 = vpop.permute.xlu0 %1476
        %1478 = vrot.lane.b32.xlu0 %v488, 32
        %v1479 = vpop.permute.xlu0 %1478
        %1480 = vrot.lane.b32.xlu0 %v489, 32
        %v1481 = vpop.permute.xlu0 %1480
        %vm1514 = vcmask 31744
        %v1515 = vsel %vm1514, %v186, %v523
        %v1516 = vsel %vm1514, %v187, %v525
        %v1517 = vsel %vm1514, %v188, %v527
        %v1518 = vsel %vm1514, %v189, %v529
        %v1519 = vsel %vm1514, %v190, %v531
        %v1520 = vsel %vm1514, %v191, %v533
        %v1521 = vsel %vm1514, %v192, %v535
        %v1522 = vsel %vm1514, %v193, %v537
        %v1523 = vsel %vm1514, %v194, %v539
        %v1524 = vsel %vm1514, %v195, %v541
        %v1525 = vsel %vm1514, %v196, %v543
        %v1526 = vsel %vm1514, %v197, %v545
        %v1527 = vsel %vm1514, %v198, %v547
        %v1528 = vsel %vm1514, %v199, %v549
        %v1529 = vsel %vm1514, %v200, %v551
        %v1530 = vsel %vm1514, %v201, %v553
        %v1531 = vsel %vm1514, %v202, %v555
        %v1532 = vsel %vm1514, %v203, %v557
        %v1533 = vsel %vm1514, %v204, %v559
        %v1534 = vsel %vm1514, %v205, %v561
        %v1535 = vsel %vm1514, %v206, %v563
        %v1536 = vsel %vm1514, %v207, %v565
        %v1537 = vsel %vm1514, %v208, %v567
        %v1538 = vsel %vm1514, %v209, %v569
        %v1539 = vsel %vm1514, %v210, %v571
        %v1540 = vsel %vm1514, %v211, %v573
        %v1541 = vsel %vm1514, %v212, %v575
        %v1542 = vsel %vm1514, %v213, %v577
        %v1543 = vsel %vm1514, %v214, %v579
        %v1544 = vsel %vm1514, %v215, %v581
        %v1545 = vsel %vm1514, %v216, %v583
        %v1546 = vsel %vm1514, %v217, %v585
        %vm1547 = vcmask 64512
        %v1548 = vsel %vm1547, %v1515, %v651
        %v1549 = vsel %vm1547, %v1516, %v653
        %v1550 = vsel %vm1547, %v1517, %v655
        %v1551 = vsel %vm1547, %v1518, %v657
        %v1552 = vsel %vm1547, %v1519, %v659
        %v1553 = vsel %vm1547, %v1520, %v661
        %v1554 = vsel %vm1547, %v1521, %v663
        %v1555 = vsel %vm1547, %v1522, %v665
        %v1556 = vsel %vm1547, %v1523, %v667
        %v1557 = vsel %vm1547, %v1524, %v669
        %v1558 = vsel %vm1547, %v1525, %v671
        %v1559 = vsel %vm1547, %v1526, %v673
        %v1560 = vsel %vm1547, %v1527, %v675
        %v1561 = vsel %vm1547, %v1528, %v677
        %v1562 = vsel %vm1547, %v1529, %v679
        %v1563 = vsel %vm1547, %v1530, %v681
        %v1564 = vsel %vm1547, %v1531, %v683
        %v1565 = vsel %vm1547, %v1532, %v685
        %v1566 = vsel %vm1547, %v1533, %v687
        %v1567 = vsel %vm1547, %v1534, %v689
        %v1568 = vsel %vm1547, %v1535, %v691
        %v1569 = vsel %vm1547, %v1536, %v693
        %v1570 = vsel %vm1547, %v1537, %v695
        %v1571 = vsel %vm1547, %v1538, %v697
        %v1572 = vsel %vm1547, %v1539, %v699
        %v1573 = vsel %vm1547, %v1540, %v701
        %v1574 = vsel %vm1547, %v1541, %v703
        %v1575 = vsel %vm1547, %v1542, %v705
        %v1576 = vsel %vm1547, %v1543, %v707
        %v1577 = vsel %vm1547, %v1544, %v709
        %v1578 = vsel %vm1547, %v1545, %v711
        %v1579 = vsel %vm1547, %v1546, %v713
        %vm1580 = vcmask 97280
        %v1581 = vsel %vm1580, %v1548, %v779
        %v1582 = vsel %vm1580, %v1549, %v781
        %v1583 = vsel %vm1580, %v1550, %v783
        %v1584 = vsel %vm1580, %v1551, %v785
        %v1585 = vsel %vm1580, %v1552, %v787
        %v1586 = vsel %vm1580, %v1553, %v789
        %v1587 = vsel %vm1580, %v1554, %v791
        %v1588 = vsel %vm1580, %v1555, %v793
        %v1589 = vsel %vm1580, %v1556, %v795
        %v1590 = vsel %vm1580, %v1557, %v797
        %v1591 = vsel %vm1580, %v1558, %v799
        %v1592 = vsel %vm1580, %v1559, %v801
        %v1593 = vsel %vm1580, %v1560, %v803
        %v1594 = vsel %vm1580, %v1561, %v805
        %v1595 = vsel %vm1580, %v1562, %v807
        %v1596 = vsel %vm1580, %v1563, %v809
        %v1597 = vsel %vm1580, %v1564, %v811
        %v1598 = vsel %vm1580, %v1565, %v813
        %v1599 = vsel %vm1580, %v1566, %v815
        %v1600 = vsel %vm1580, %v1567, %v817
        %v1601 = vsel %vm1580, %v1568, %v819
        %v1602 = vsel %vm1580, %v1569, %v821
        %v1603 = vsel %vm1580, %v1570, %v823
        %v1604 = vsel %vm1580, %v1571, %v825
        %v1605 = vsel %vm1580, %v1572, %v827
        %v1606 = vsel %vm1580, %v1573, %v829
        %v1607 = vsel %vm1580, %v1574, %v831
        %v1608 = vsel %vm1580, %v1575, %v833
        %v1609 = vsel %vm1580, %v1576, %v835
        %v1610 = vsel %vm1580, %v1577, %v837
        %v1611 = vsel %vm1580, %v1578, %v839
        %v1612 = vsel %vm1580, %v1579, %v841
        %vm1613 = vcmask 130048
        %v1614 = vsel %vm1613, %v1581, %v907
        %v1615 = vsel %vm1613, %v1582, %v909
        %v1616 = vsel %vm1613, %v1583, %v911
        %v1617 = vsel %vm1613, %v1584, %v913
        %v1618 = vsel %vm1613, %v1585, %v915
        %v1619 = vsel %vm1613, %v1586, %v917
        %v1620 = vsel %vm1613, %v1587, %v919
        %v1621 = vsel %vm1613, %v1588, %v921
        %v1622 = vsel %vm1613, %v1589, %v923
        %v1623 = vsel %vm1613, %v1590, %v925
        %v1624 = vsel %vm1613, %v1591, %v927
        %v1625 = vsel %vm1613, %v1592, %v929
        %v1626 = vsel %vm1613, %v1593, %v931
        %v1627 = vsel %vm1613, %v1594, %v933
        %v1628 = vsel %vm1613, %v1595, %v935
        %v1629 = vsel %vm1613, %v1596, %v937
        %v1630 = vsel %vm1613, %v1597, %v939
        %v1631 = vsel %vm1613, %v1598, %v941
        %v1632 = vsel %vm1613, %v1599, %v943
        %v1633 = vsel %vm1613, %v1600, %v945
        %v1634 = vsel %vm1613, %v1601, %v947
        %v1635 = vsel %vm1613, %v1602, %v949
        %v1636 = vsel %vm1613, %v1603, %v951
        %v1637 = vsel %vm1613, %v1604, %v953
        %v1638 = vsel %vm1613, %v1605, %v955
        %v1639 = vsel %vm1613, %v1606, %v957
        %v1640 = vsel %vm1613, %v1607, %v959
        %v1641 = vsel %vm1613, %v1608, %v961
        %v1642 = vsel %vm1613, %v1609, %v963
        %v1643 = vsel %vm1613, %v1610, %v965
        %v1644 = vsel %vm1613, %v1611, %v967
        %v1645 = vsel %vm1613, %v1612, %v969
        %vm1646 = vcmask 162816
        %v1647 = vsel %vm1646, %v1614, %v1035
        %v1648 = vsel %vm1646, %v1615, %v1037
        %v1649 = vsel %vm1646, %v1616, %v1039
        %v1650 = vsel %vm1646, %v1617, %v1041
        %v1651 = vsel %vm1646, %v1618, %v1043
        %v1652 = vsel %vm1646, %v1619, %v1045
        %v1653 = vsel %vm1646, %v1620, %v1047
        %v1654 = vsel %vm1646, %v1621, %v1049
        %v1655 = vsel %vm1646, %v1622, %v1051
        %v1656 = vsel %vm1646, %v1623, %v1053
        %v1657 = vsel %vm1646, %v1624, %v1055
        %v1658 = vsel %vm1646, %v1625, %v1057
        %v1659 = vsel %vm1646, %v1626, %v1059
        %v1660 = vsel %vm1646, %v1627, %v1061
        %v1661 = vsel %vm1646, %v1628, %v1063
        %v1662 = vsel %vm1646, %v1629, %v1065
        %v1663 = vsel %vm1646, %v1630, %v1067
        %v1664 = vsel %vm1646, %v1631, %v1069
        %v1665 = vsel %vm1646, %v1632, %v1071
        %v1666 = vsel %vm1646, %v1633, %v1073
        %v1667 = vsel %vm1646, %v1634, %v1075
        %v1668 = vsel %vm1646, %v1635, %v1077
        %v1669 = vsel %vm1646, %v1636, %v1079
        %v1670 = vsel %vm1646, %v1637, %v1081
        %v1671 = vsel %vm1646, %v1638, %v1083
        %v1672 = vsel %vm1646, %v1639, %v1085
        %v1673 = vsel %vm1646, %v1640, %v1087
        %v1674 = vsel %vm1646, %v1641, %v1089
        %v1675 = vsel %vm1646, %v1642, %v1091
        %v1676 = vsel %vm1646, %v1643, %v1093
        %v1677 = vsel %vm1646, %v1644, %v1095
        %v1678 = vsel %vm1646, %v1645, %v1097
        %vm1679 = vcmask 195584
        %v1680 = vsel %vm1679, %v1647, %v1163
        %v1681 = vsel %vm1679, %v1648, %v1165
        %v1682 = vsel %vm1679, %v1649, %v1167
        %v1683 = vsel %vm1679, %v1650, %v1169
        %v1684 = vsel %vm1679, %v1651, %v1171
        %v1685 = vsel %vm1679, %v1652, %v1173
        %v1686 = vsel %vm1679, %v1653, %v1175
        %v1687 = vsel %vm1679, %v1654, %v1177
        %v1688 = vsel %vm1679, %v1655, %v1179
        %v1689 = vsel %vm1679, %v1656, %v1181
        %v1690 = vsel %vm1679, %v1657, %v1183
        %v1691 = vsel %vm1679, %v1658, %v1185
        %v1692 = vsel %vm1679, %v1659, %v1187
        %v1693 = vsel %vm1679, %v1660, %v1189
        %v1694 = vsel %vm1679, %v1661, %v1191
        %v1695 = vsel %vm1679, %v1662, %v1193
        %v1696 = vsel %vm1679, %v1663, %v1195
        %v1697 = vsel %vm1679, %v1664, %v1197
        %v1698 = vsel %vm1679, %v1665, %v1199
        %v1699 = vsel %vm1679, %v1666, %v1201
        %v1700 = vsel %vm1679, %v1667, %v1203
        %v1701 = vsel %vm1679, %v1668, %v1205
        %v1702 = vsel %vm1679, %v1669, %v1207
        %v1703 = vsel %vm1679, %v1670, %v1209
        %v1704 = vsel %vm1679, %v1671, %v1211
        %v1705 = vsel %vm1679, %v1672, %v1213
        %v1706 = vsel %vm1679, %v1673, %v1215
        %v1707 = vsel %vm1679, %v1674, %v1217
        %v1708 = vsel %vm1679, %v1675, %v1219
        %v1709 = vsel %vm1679, %v1676, %v1221
        %v1710 = vsel %vm1679, %v1677, %v1223
        %v1711 = vsel %vm1679, %v1678, %v1225
        %vm1712 = vcmask 228352
        %v1713 = vsel %vm1712, %v1680, %v1291
        %v1714 = vsel %vm1712, %v1681, %v1293
        %v1715 = vsel %vm1712, %v1682, %v1295
        %v1716 = vsel %vm1712, %v1683, %v1297
        %v1717 = vsel %vm1712, %v1684, %v1299
        %v1718 = vsel %vm1712, %v1685, %v1301
        %v1719 = vsel %vm1712, %v1686, %v1303
        %v1720 = vsel %vm1712, %v1687, %v1305
        %v1721 = vsel %vm1712, %v1688, %v1307
        %v1722 = vsel %vm1712, %v1689, %v1309
        %v1723 = vsel %vm1712, %v1690, %v1311
        %v1724 = vsel %vm1712, %v1691, %v1313
        %v1725 = vsel %vm1712, %v1692, %v1315
        %v1726 = vsel %vm1712, %v1693, %v1317
        %v1727 = vsel %vm1712, %v1694, %v1319
        %v1728 = vsel %vm1712, %v1695, %v1321
        %v1729 = vsel %vm1712, %v1696, %v1323
        %v1730 = vsel %vm1712, %v1697, %v1325
        %v1731 = vsel %vm1712, %v1698, %v1327
        %v1732 = vsel %vm1712, %v1699, %v1329
        %v1733 = vsel %vm1712, %v1700, %v1331
        %v1734 = vsel %vm1712, %v1701, %v1333
        %v1735 = vsel %vm1712, %v1702, %v1335
        %v1736 = vsel %vm1712, %v1703, %v1337
        %v1737 = vsel %vm1712, %v1704, %v1339
        %v1738 = vsel %vm1712, %v1705, %v1341
        %v1739 = vsel %vm1712, %v1706, %v1343
        %v1740 = vsel %vm1712, %v1707, %v1345
        %v1741 = vsel %vm1712, %v1708, %v1347
        %v1742 = vsel %vm1712, %v1709, %v1349
        %v1743 = vsel %vm1712, %v1710, %v1351
        %v1744 = vsel %vm1712, %v1711, %v1353
        %vm1745 = vcmask 261120
        %v1746 = vsel %vm1745, %v1713, %v1419
        %v1747 = vsel %vm1745, %v1714, %v1421
        %v1748 = vsel %vm1745, %v1715, %v1423
        %v1749 = vsel %vm1745, %v1716, %v1425
        %v1750 = vsel %vm1745, %v1717, %v1427
        %v1751 = vsel %vm1745, %v1718, %v1429
        %v1752 = vsel %vm1745, %v1719, %v1431
        %v1753 = vsel %vm1745, %v1720, %v1433
        %v1754 = vsel %vm1745, %v1721, %v1435
        %v1755 = vsel %vm1745, %v1722, %v1437
        %v1756 = vsel %vm1745, %v1723, %v1439
        %v1757 = vsel %vm1745, %v1724, %v1441
        %v1758 = vsel %vm1745, %v1725, %v1443
        %v1759 = vsel %vm1745, %v1726, %v1445
        %v1760 = vsel %vm1745, %v1727, %v1447
        %v1761 = vsel %vm1745, %v1728, %v1449
        %v1762 = vsel %vm1745, %v1729, %v1451
        %v1763 = vsel %vm1745, %v1730, %v1453
        %v1764 = vsel %vm1745, %v1731, %v1455
        %v1765 = vsel %vm1745, %v1732, %v1457
        %v1766 = vsel %vm1745, %v1733, %v1459
        %v1767 = vsel %vm1745, %v1734, %v1461
        %v1768 = vsel %vm1745, %v1735, %v1463
        %v1769 = vsel %vm1745, %v1736, %v1465
        %v1770 = vsel %vm1745, %v1737, %v1467
        %v1771 = vsel %vm1745, %v1738, %v1469
        %v1772 = vsel %vm1745, %v1739, %v1471
        %v1773 = vsel %vm1745, %v1740, %v1473
        %v1774 = vsel %vm1745, %v1741, %v1475
        %v1775 = vsel %vm1745, %v1742, %v1477
        %v1776 = vsel %vm1745, %v1743, %v1479
        %v1777 = vsel %vm1745, %v1744, %v1481
        %v1778 = vld [vmem:[%s1] sm:$0xff]
        %v1779 = vld [vmem:[%s1 + $0x8] sm:$0xff]
        %v1780 = vld [vmem:[%s1 + $0x10] sm:$0xff]
        %v1781 = vld [vmem:[%s1 + $0x18] sm:$0xff]
        %v1782 = vld [vmem:[%s1 + $0x20] sm:$0xf]
        %v1783 = vld [vmem:[%s2] sm:$0x1]
        %v1785 = vperm.slane %v1783, 0
        %vm1787 = vcmask 293888
        %v1789 = vsel %vm1787, %v1746, 0
        %v1792 = vsel %vm1787, %v1747, 0
        %v1795 = vsel %vm1787, %v1748, 0
        %v1798 = vsel %vm1787, %v1749, 0
        %v1801 = vsel %vm1787, %v1750, 0
        %v1804 = vsel %vm1787, %v1751, 0
        %v1807 = vsel %vm1787, %v1752, 0
        %v1810 = vsel %vm1787, %v1753, 0
        %v1813 = vsel %vm1787, %v1754, 0
        %v1816 = vsel %vm1787, %v1755, 0
        %v1819 = vsel %vm1787, %v1756, 0
        %v1822 = vsel %vm1787, %v1757, 0
        %v1825 = vsel %vm1787, %v1758, 0
        %v1828 = vsel %vm1787, %v1759, 0
        %v1831 = vsel %vm1787, %v1760, 0
        %v1834 = vsel %vm1787, %v1761, 0
        %v1837 = vsel %vm1787, %v1762, 0
        %v1840 = vsel %vm1787, %v1763, 0
        %v1843 = vsel %vm1787, %v1764, 0
        %v1846 = vsel %vm1787, %v1765, 0
        %v1849 = vsel %vm1787, %v1766, 0
        %v1852 = vsel %vm1787, %v1767, 0
        %v1855 = vsel %vm1787, %v1768, 0
        %v1858 = vsel %vm1787, %v1769, 0
        %v1861 = vsel %vm1787, %v1770, 0
        %v1864 = vsel %vm1787, %v1771, 0
        %v1867 = vsel %vm1787, %v1772, 0
        %v1870 = vsel %vm1787, %v1773, 0
        %v1873 = vsel %vm1787, %v1774, 0
        %v1876 = vsel %vm1787, %v1775, 0
        %v1879 = vsel %vm1787, %v1776, 0
        %v1882 = vsel %vm1787, %v1777, 0
        %vm1884 = vcmask 1043456
        %v1886 = vsel %vm1884, %v1782, 0
        %1888 = vmatpush.msra.mxu0 0.0
        %1889 = vmatpush.msra.mxu0 0.0
        %1890 = vmatpush.msra.mxu0 0.0
        %1891 = vmatpush.msra.mxu0 0.0
        %1892 = vmatpush.msra.mxu0 0.0
        %1893 = vmatpush.msra.mxu0 0.0
        %1894 = vmatpush.msra.mxu0 0.0
        %1895 = vmatpush.msra.mxu0 0.0
        %1896 = vmatpush.msra.mxu0 0.0
        %1897 = vmatpush.msra.mxu0 0.0
        %1898 = vmatpush.msra.mxu0 0.0
        %1899 = vmatpush.msra.mxu0 %v1886
        %1900 = vmatpush.msra.mxu0 %v1781
        %1901 = vmatpush.msra.mxu0 %v1780
        %1902 = vmatpush.msra.mxu0 %v1779
        %1903 = vmatpush.msra.mxu0 %v1778
        %1904 = vmatmul.f32.gmra.mxu0 %v1789
        %v1905 = vpop.f32.mrf.mxu0
        %v1906 = vadd.f32 %v1785, %v1905
        %1907 = vmatmul.f32.gmra.mxu0 %v1792
        %v1908 = vpop.f32.mrf.mxu0
        %v1909 = vadd.f32 %v1785, %v1908
        %1910 = vmatmul.f32.gmra.mxu0 %v1795
        %v1911 = vpop.f32.mrf.mxu0
        %v1912 = vadd.f32 %v1785, %v1911
        %1913 = vmatmul.f32.gmra.mxu0 %v1798
        %v1914 = vpop.f32.mrf.mxu0
        %v1915 = vadd.f32 %v1785, %v1914
        %1916 = vmatmul.f32.gmra.mxu0 %v1801
        %v1917 = vpop.f32.mrf.mxu0
        %v1918 = vadd.f32 %v1785, %v1917
        %1919 = vmatmul.f32.gmra.mxu0 %v1804
        %v1920 = vpop.f32.mrf.mxu0
        %v1921 = vadd.f32 %v1785, %v1920
        %1922 = vmatmul.f32.gmra.mxu0 %v1807
        %v1923 = vpop.f32.mrf.mxu0
        %v1924 = vadd.f32 %v1785, %v1923
        %1925 = vmatmul.f32.gmra.mxu0 %v1810
        %v1926 = vpop.f32.mrf.mxu0
        %v1927 = vadd.f32 %v1785, %v1926
        %1928 = vmatmul.f32.gmra.mxu0 %v1813
        %v1929 = vpop.f32.mrf.mxu0
        %v1930 = vadd.f32 %v1785, %v1929
        %1931 = vmatmul.f32.gmra.mxu0 %v1816
        %v1932 = vpop.f32.mrf.mxu0
        %v1933 = vadd.f32 %v1785, %v1932
        %1934 = vmatmul.f32.gmra.mxu0 %v1819
        %v1935 = vpop.f32.mrf.mxu0
        %v1936 = vadd.f32 %v1785, %v1935
        %1937 = vmatmul.f32.gmra.mxu0 %v1822
        %v1938 = vpop.f32.mrf.mxu0
        %v1939 = vadd.f32 %v1785, %v1938
        %1940 = vmatmul.f32.gmra.mxu0 %v1825
        %v1941 = vpop.f32.mrf.mxu0
        %v1942 = vadd.f32 %v1785, %v1941
        %1943 = vmatmul.f32.gmra.mxu0 %v1828
        %v1944 = vpop.f32.mrf.mxu0
        %v1945 = vadd.f32 %v1785, %v1944
        %1946 = vmatmul.f32.gmra.mxu0 %v1831
        %v1947 = vpop.f32.mrf.mxu0
        %v1948 = vadd.f32 %v1785, %v1947
        %1949 = vmatmul.f32.gmra.mxu0 %v1834
        %v1950 = vpop.f32.mrf.mxu0
        %v1951 = vadd.f32 %v1785, %v1950
        %1952 = vmatmul.f32.gmra.mxu0 %v1837
        %v1953 = vpop.f32.mrf.mxu0
        %v1954 = vadd.f32 %v1785, %v1953
        %1955 = vmatmul.f32.gmra.mxu0 %v1840
        %v1956 = vpop.f32.mrf.mxu0
        %v1957 = vadd.f32 %v1785, %v1956
        %1958 = vmatmul.f32.gmra.mxu0 %v1843
        %v1959 = vpop.f32.mrf.mxu0
        %v1960 = vadd.f32 %v1785, %v1959
        %1961 = vmatmul.f32.gmra.mxu0 %v1846
        %v1962 = vpop.f32.mrf.mxu0
        %v1963 = vadd.f32 %v1785, %v1962
        %1964 = vmatmul.f32.gmra.mxu0 %v1849
        %v1965 = vpop.f32.mrf.mxu0
        %v1966 = vadd.f32 %v1785, %v1965
        %1967 = vmatmul.f32.gmra.mxu0 %v1852
        %v1968 = vpop.f32.mrf.mxu0
        %v1969 = vadd.f32 %v1785, %v1968
        %1970 = vmatmul.f32.gmra.mxu0 %v1855
        %v1971 = vpop.f32.mrf.mxu0
        %v1972 = vadd.f32 %v1785, %v1971
        %1973 = vmatmul.f32.gmra.mxu0 %v1858
        %v1974 = vpop.f32.mrf.mxu0
        %v1975 = vadd.f32 %v1785, %v1974
        %1976 = vmatmul.f32.gmra.mxu0 %v1861
        %v1977 = vpop.f32.mrf.mxu0
        %v1978 = vadd.f32 %v1785, %v1977
        %1979 = vmatmul.f32.gmra.mxu0 %v1864
        %v1980 = vpop.f32.mrf.mxu0
        %v1981 = vadd.f32 %v1785, %v1980
        %1982 = vmatmul.f32.gmra.mxu0 %v1867
        %v1983 = vpop.f32.mrf.mxu0
        %v1984 = vadd.f32 %v1785, %v1983
        %1985 = vmatmul.f32.gmra.mxu0 %v1870
        %v1986 = vpop.f32.mrf.mxu0
        %v1987 = vadd.f32 %v1785, %v1986
        %1988 = vmatmul.f32.gmra.mxu0 %v1873
        %v1989 = vpop.f32.mrf.mxu0
        %v1990 = vadd.f32 %v1785, %v1989
        %1991 = vmatmul.f32.gmra.mxu0 %v1876
        %v1992 = vpop.f32.mrf.mxu0
        %v1993 = vadd.f32 %v1785, %v1992
        %1994 = vmatmul.f32.gmra.mxu0 %v1879
        %v1995 = vpop.f32.mrf.mxu0
        %v1996 = vadd.f32 %v1785, %v1995
        %1997 = vmatmul.f32.gmra.mxu0 %v1882
        %v1998 = vpop.f32.mrf.mxu0
        %v1999 = vadd.f32 %v1785, %v1998
        %2000 = vdwg.mxu0
        %2001 = vst [vmem:[%s177] sm:$0xff] %v1906
        %2002 = vst [vmem:[%s177 + $0x8] sm:$0xff] %v1909
        %2003 = vst [vmem:[%s177 + $0x10] sm:$0xff] %v1912
        %2004 = vst [vmem:[%s177 + $0x18] sm:$0xff] %v1915
        %2005 = vst [vmem:[%s177 + $0x20] sm:$0xff] %v1918
        %2006 = vst [vmem:[%s177 + $0x28] sm:$0xff] %v1921
        %2007 = vst [vmem:[%s177 + $0x30] sm:$0xff] %v1924
        %2008 = vst [vmem:[%s177 + $0x38] sm:$0xff] %v1927
        %2009 = vst [vmem:[%s177 + $0x40] sm:$0xff] %v1930
        %2010 = vst [vmem:[%s177 + $0x48] sm:$0xff] %v1933
        %2011 = vst [vmem:[%s177 + $0x50] sm:$0xff] %v1936
        %2012 = vst [vmem:[%s177 + $0x58] sm:$0xff] %v1939
        %2013 = vst [vmem:[%s177 + $0x60] sm:$0xff] %v1942
        %2014 = vst [vmem:[%s177 + $0x68] sm:$0xff] %v1945
        %2015 = vst [vmem:[%s177 + $0x70] sm:$0xff] %v1948
        %2016 = vst [vmem:[%s177 + $0x78] sm:$0xff] %v1951
        %2017 = vst [vmem:[%s177 + $0x80] sm:$0xff] %v1954
        %2018 = vst [vmem:[%s177 + $0x88] sm:$0xff] %v1957
        %2019 = vst [vmem:[%s177 + $0x90] sm:$0xff] %v1960
        %2020 = vst [vmem:[%s177 + $0x98] sm:$0xff] %v1963
        %2021 = vst [vmem:[%s177 + $0xa0] sm:$0xff] %v1966
        %2022 = vst [vmem:[%s177 + $0xa8] sm:$0xff] %v1969
        %2023 = vst [vmem:[%s177 + $0xb0] sm:$0xff] %v1972
        %2024 = vst [vmem:[%s177 + $0xb8] sm:$0xff] %v1975
        %2025 = vst [vmem:[%s177 + $0xc0] sm:$0xff] %v1978
        %2026 = vst [vmem:[%s177 + $0xc8] sm:$0xff] %v1981
        %2027 = vst [vmem:[%s177 + $0xd0] sm:$0xff] %v1984
        %2028 = vst [vmem:[%s177 + $0xd8] sm:$0xff] %v1987
        %2029 = vst [vmem:[%s177 + $0xe0] sm:$0xff] %v1990
        %2030 = vst [vmem:[%s177 + $0xe8] sm:$0xff] %v1993
        %2031 = vst [vmem:[%s177 + $0xf0] sm:$0xff] %v1996
        %2032 = vst [vmem:[%s177 + $0xf8] sm:$0xff] %v1999
        %s2033 = sand.u32 %s107, 1
        %s2034 = scalar_lea.sflag [#allocation3], %s2033
        %s2035 = sand.u32 %s107, 1
        %s2036 = smul.addr %s2035, 256
        %s2037 = scalar_lea.vmem [#allocation2], %s2036
        // Predicated region
        $region33: #{tpu_custom_call.1} parent=31 // pred_check
          %p2038 = pneg %p117
        $region34: #{tpu_custom_call.1} parent=31 // pred_check_branch
          %2040 = sbr.rel (%p2038) target = $region36
        $region35: #{tpu_custom_call.1} parent=31 // pred_region
          %s2041 = smul.u32 32, %s22
          %2043 = vsyncadd %s2034, 0
          %s2044 = smul.addr %s21, 32
          %s2045 = sadd.s32 %s2041, %s2044
          %s2046 = smul.addr %s2045, 8
          %s2047 = scalar_lea.hbm %s3, %s2046
          %s2048 = sshll.u32 %s2037, 4
          %s2049 = int_to_ptr.vmem [resolvable:$true] %s2048
          %s2050 = sshll.u32 %s2047, 4
          %s2051 = int_to_ptr.hbm [resolvable:$true] %s2050
          %2056 = dma.vmem_to_hbm [thread:$0]  %s2049, 4096, %s2051, %s2034, 128, 128, 8
        $region36: #{tpu_custom_call.1} parent=31 // pred_fallthru
          _
      $region32: #{tpu_custom_call.1} parent=5 // pred_fallthru
        _
      %p2057 = scmp.le.s32.totalorder 2, %s12
      // Predicated region
      $region37: #{tpu_custom_call.1} parent=5 // pred_check
        %p2058 = pneg %p2057
      $region38: #{tpu_custom_call.1} parent=5 // pred_check_branch
        %2060 = sbr.rel (%p2058) target = $region40
      $region39: #{tpu_custom_call.1} parent=5 // pred_region
        %s2061 = ssub.s32 %s12, 2
        // Predicated region
        $region41: #{tpu_custom_call.1} parent=39 // pred_check
          %p2062 = pneg %p123
        $region42: #{tpu_custom_call.1} parent=39 // pred_check_branch
          %2064 = sbr.rel (%p2062) target = $region44
        $region43: #{tpu_custom_call.1} parent=39 // pred_region
          %s2065 = sand.u32 %s108, 1
          %s2066 = scalar_lea.sflag [#allocation3], %s2065
          %s2067 = sand.u32 %s108, 1
          %s2068 = smul.addr %s2067, 256
          %s2069 = scalar_lea.vmem [#allocation2], %s2068
          %2071 = dma.done %s2066, 4096
        $region44: #{tpu_custom_call.1} parent=39 // pred_fallthru
          _
      $region40: #{tpu_custom_call.1} parent=5 // pred_fallthru
        _
    $region6: #{tpu_custom_call.1} parent=1 // loop_footer
      %s16 = sadd.s32 1, %s12
    $region7: #{tpu_custom_call.1} parent=1 // loop_footer_branch
      %11 = sbr.rel target = $region3
    $region8: #{tpu_custom_call.1} parent=1 // loop_exit
      _
    %2072 = vsyncpa [#allocation3], 1
    %s2073 = scalar_lea.sflag [#allocation3], 1
    %2074 = vsyncpa %s2073, 1

</llo_original>
